<compile_context>
chip_gen: v7x
topology: tpu7x:2x2x1
jax: 0.10.0
libtpu: 0.0.40
codegen_flags: <defaults>
</compile_context>

<pallas_src>
import functools

import jax
import jax.numpy as jnp
from jax.experimental import pallas as pl
from jax.experimental.pallas import tpu as pltpu


# -----------------------------------------------------------------------------
# Pallas kernel: full sequence recurrence for one 8-row batch block.
# -----------------------------------------------------------------------------
def _reacher_kernel(
    x_ref,        # (seq*BB, 2H)   bf16  (features zero-padded to 2H lanes)
    w_ref,        # (5, 2H, 4H)    bf16  [wf1, wf2, wf3, W1 pad, W2 pad]
    bias_ref,     # (5, BB, 4H)    f32   [bf1, bf2, bf3, b1 pad, b2 pad]
    out_ref,      # (seq*BB, 4H)   f32   lane-dense output (first 8 lanes real)
    h_all_ref,    # (seq*BB, H)    f32   VMEM scratch
    *, hidden: int, seq: int, bb: int,
):
    H = hidden
    BB = bb
    f32 = jnp.float32
    bf16 = jnp.bfloat16

    # ---- hoist loop-invariant weight / bias views out of the recurrence ----
    wf1 = w_ref[0]                       # (2H, 4H) bf16, lstm1 [Wih; Whh]
    wf2 = w_ref[1]
    wf3 = w_ref[2]
    w2s = w_ref[4][:H, :]                # (H, 4H)  bf16, lane-padded linear2
    bf1 = bias_ref[0]                    # (BB, 4H) f32, pre-broadcast bih+bhh
    bf2 = bias_ref[1]
    bf3 = bias_ref[2]
    b1v = bias_ref[3][0:1, :H]           # (1, H)   f32
    b2v = bias_ref[4][0:1, :]            # (1, 4H)  f32

    # ---- linear1 for every timestep with a single MXU push ----
    hid_all = (jnp.dot(x_ref[...], w_ref[3],
                       preferred_element_type=f32)[:, :H]
               + b1v)                                          # (seq*BB, H) f32

    def gates_of(x, h, wf, bf):
        # Fused [x | h] @ [Wih ; Whh] + (bih + bhh): one MXU push per cell.
        xc = jnp.concatenate([x, h], axis=1).astype(bf16)      # (BB, 2H) bf16
        return jnp.dot(xc, wf, preferred_element_type=f32) + bf  # (BB, 4H) f32

    def lstm_cell(x, h, c, wf, bf):
        g = gates_of(x, h, wf, bf)
        # Full-vreg activations (4H == 128 lanes), slice afterwards.
        s = jax.nn.sigmoid(g)
        t = jnp.tanh(g)
        i, f, o = s[:, :H], s[:, H:2 * H], s[:, 3 * H:]
        gg = t[:, 2 * H:3 * H]
        c_new = f * c + i * gg
        return o * jnp.tanh(c_new), c_new

    z = jnp.zeros((BB, H), f32)
    h1 = c1 = h2 = c2 = h3 = z

    # Fully unrolled time recurrence (seq is small).
    # TODO(synk): switch to lax.fori_loop + pl.ds indexing if seq grows >~32.
    for t in range(seq):
        hid = hid_all[t * BB:(t + 1) * BB]                     # static slice

        h1, c1 = lstm_cell(hid, h1, c1, wf1, bf1)
        # lstm2: its new cell is immediately clobbered by lstm3 (module bug).
        h2, _ = lstm_cell(h1, h2, c2, wf2, bf2)
        # lstm3: c_t3 never updated by the module -> provably zero, so the
        # forget-gate term vanishes; its new cell overwrites c2 (bug kept).
        g3 = gates_of(h2, h3, wf3, bf3)
        s3 = jax.nn.sigmoid(g3)
        t3 = jnp.tanh(g3)
        c2 = s3[:, :H] * t3[:, 2 * H:3 * H]                    # i3 * g3
        h3 = s3[:, 3 * H:] * jnp.tanh(c2)                      # o3 * tanh(c')

        h_all_ref[t * BB:(t + 1) * BB, :] = h3                 # bound liveness

    # ---- linear2 for every timestep at once; one lane-dense (128) store ----
    y = (jnp.dot(h_all_ref[...].astype(bf16), w2s,
                 preferred_element_type=f32)
         + b2v)                                                # (seq*BB, 4H)
    out_ref[...] = y


# -----------------------------------------------------------------------------
# Wrapper: layout plumbing + weight packing/fusion + pallas_call
# -----------------------------------------------------------------------------
def reacher_forward(x_bsn, params, hidden):
    """x_bsn: (batch, seq, n_inputs) float32 -> (batch, seq, 8) float32."""
    batch, seq, n_in = x_bsn.shape
    H = hidden
    assert 4 * H == 128, "packing assumes hidden == 32 (4H == one lane vreg)"
    assert n_in <= 2 * H
    BB = 8                                        # sublane-width batch block
    Bp = -(-batch // BB) * BB
    nblk = Bp // BB
    rows = seq * BB
    K1 = 2 * H                                    # padded linear1 K (== slab K)
    NOUT = 4 * H                                  # lane-dense linear2 width

    (w1, b1,
     wih1, whh1, bih1, bhh1,
     wih2, whh2, bih2, bhh2,
     wih3, whh3, bih3, bhh3,
     w2, b2) = params

    # ---- x layout: (batch, seq, F) -> (nblk*seq*BB, K1), batch on sublanes --
    x = x_bsn
    if Bp != batch:
        x = jnp.pad(x, ((0, Bp - batch), (0, 0), (0, 0)))
    x = jnp.pad(x, ((0, 0), (0, 0), (0, K1 - n_in)))           # zero-pad feats
    x = x.reshape(nblk, BB, seq, K1).transpose(0, 2, 1, 3)
    x = x.reshape(nblk * rows, K1).astype(jnp.bfloat16)

    # ---- packed weight slab (5, 2H, 4H) bf16 ----
    def pad2(a, r, c):
        return jnp.pad(a, ((0, r - a.shape[0]), (0, c - a.shape[1])))

    wf1 = jnp.concatenate([wih1, whh1], axis=0)                # (2H, 4H)
    wf2 = jnp.concatenate([wih2, whh2], axis=0)
    wf3 = jnp.concatenate([wih3, whh3], axis=0)
    w_all = jnp.stack(
        [wf1, wf2, wf3, pad2(w1, 2 * H, 4 * H), pad2(w2, 2 * H, 4 * H)],
        axis=0).astype(jnp.bfloat16)

    # ---- packed bias slab (5, BB, 4H) f32, LSTM biases pre-broadcast -------
    def brow(v):
        v = v.reshape(1, -1)
        v = jnp.pad(v, ((0, 0), (0, 4 * H - v.shape[1])))
        return jnp.broadcast_to(v, (BB, 4 * H))

    bias_all = jnp.stack(
        [brow(bih1 + bhh1), brow(bih2 + bhh2), brow(bih3 + bhh3),
         brow(b1), brow(b2)],
        axis=0).astype(jnp.float32)

    kernel = functools.partial(_reacher_kernel, hidden=H, seq=seq, bb=BB)

    out = pl.pallas_call(
        kernel,
        out_shape=jax.ShapeDtypeStruct((nblk * rows, NOUT), jnp.float32),
        grid_spec=pltpu.PrefetchScalarGridSpec(
            num_scalar_prefetch=0,
            grid=(nblk,),
            in_specs=[
                pl.BlockSpec((rows, K1), lambda b: (b, 0)),            # x
                pl.BlockSpec((5, 2 * H, 4 * H), lambda b: (0, 0, 0)),  # weights
                pl.BlockSpec((5, BB, 4 * H), lambda b: (0, 0, 0)),     # biases
            ],
            out_specs=pl.BlockSpec((rows, NOUT), lambda b: (b, 0)),
            scratch_shapes=[pltpu.VMEM((rows, H), jnp.float32)],
        ),
        compiler_params=pltpu.CompilerParams(
            dimension_semantics=("parallel",),     # batch blocks -> megacore
        ),
    )(x, w_all, bias_all)

    # (nblk*seq*BB, 128) -> (batch, seq, 8)
    out = out.reshape(nblk, seq, BB, NOUT).transpose(0, 2, 1, 3)
    out = out.reshape(Bp, seq, NOUT)[:batch, :, :8]
    return out


# -----------------------------------------------------------------------------
# Pure-JAX f32 reference (same bug-for-bug semantics) for verification
# -----------------------------------------------------------------------------
def reacher_forward_ref(x_bsn, params, hidden):
    (w1, b1,
     wih1, whh1, bih1, bhh1,
     wih2, whh2, bih2, bhh2,
     wih3, whh3, bih3, bhh3,
     w2, b2) = params
    batch, seq, _ = x_bsn.shape
    H = hidden

    def cell(x, h, c, wih, whh, bih, bhh):
        g = x @ wih + bih + h @ whh + bhh
        i = jax.nn.sigmoid(g[:, :H])
        f = jax.nn.sigmoid(g[:, H:2 * H])
        gg = jnp.tanh(g[:, 2 * H:3 * H])
        o = jax.nn.sigmoid(g[:, 3 * H:])
        c_new = f * c + i * gg
        return o * jnp.tanh(c_new), c_new

    z = jnp.zeros((batch, H), jnp.float32)
    h1, c1, h2, c2, h3, c3 = z, z, z, z, z, z
    outs = []
    for t in range(seq):
        hid = x_bsn[:, t, :] @ w1 + b1
        h1, c1 = cell(hid, h1, c1, wih1, whh1, bih1, bhh1)
        h2, c2 = cell(h1, h2, c2, wih2, whh2, bih2, bhh2)
        h3, c2 = cell(h2, h3, c3, wih3, whh3, bih3, bhh3)   # bug reproduced
        outs.append(h3 @ w2 + b2)
    return jnp.stack(outs, axis=1)


# -----------------------------------------------------------------------------
# Deterministic parameter construction (synthetic, no checkpoint)
# -----------------------------------------------------------------------------
def make_params(key, n_inputs, hidden):
    H = hidden
    ks = jax.random.split(key, 16)
    u = lambda k, shp, s: (jax.random.uniform(k, shp, jnp.float32) - 0.5) * 2.0 * s

    # Stored transposed relative to PyTorch: (in, out) so kernel does x @ W.
    w1 = u(ks[0], (n_inputs, H), 1.0 / jnp.sqrt(n_inputs))
    b1 = u(ks[1], (1, H), 1.0 / jnp.sqrt(n_inputs))

    def lstm_params(k0, k1, k2, k3, in_dim):
        s = 1.0 / jnp.sqrt(H)
        return (u(k0, (in_dim, 4 * H), s),   # weight_ih^T
                u(k1, (H, 4 * H), s),        # weight_hh^T
                u(k2, (1, 4 * H), s),        # bias_ih
                u(k3, (1, 4 * H), s))        # bias_hh

    wih1, whh1, bih1, bhh1 = lstm_params(ks[2], ks[3], ks[4], ks[5], H)
    wih2, whh2, bih2, bhh2 = lstm_params(ks[6], ks[7], ks[8], ks[9], H)
    wih3, whh3, bih3, bhh3 = lstm_params(ks[10], ks[11], ks[12], ks[13], H)

    w2 = u(ks[14], (H, 8), 1.0 / jnp.sqrt(H))
    b2 = u(ks[15], (1, 8), 1.0 / jnp.sqrt(H))

    return (w1, b1,
            wih1, whh1, bih1, bhh1,
            wih2, whh2, bih2, bhh2,
            wih3, whh3, bih3, bhh3,
            w2, b2)


if __name__ == "__main__":
    hidden = 32
    n_inputs = 20   # ff=False
    batch, seq = 2, 8

    key = jax.random.PRNGKey(0)
    k_param, k_x = jax.random.split(key)
    params = make_params(k_param, n_inputs, hidden)
    x = jax.random.normal(k_x, (batch, seq, n_inputs), jnp.float32)

    out = jax.block_until_ready(reacher_forward(x, params, hidden))
    ref = jax.block_until_ready(reacher_forward_ref(x, params, hidden))

    assert out.shape == (batch, seq, 8), out.shape
    err = float(jnp.max(jnp.abs(out - ref)))
    # bf16 MXU operands => ~1e-3-level deviation vs the pure-f32 reference.
    assert err < 2e-2, f"max abs err = {err}"

    print("KERNEL_OK")
</pallas_src>

<mosaic_0001>
module attributes {stable_mosaic.version = 11 : i64} {
  func.func @_reacher_kernel(%arg0: i32, %arg1: memref<64x64xbf16, #tpu.memory_space<vmem>>, %arg2: memref<5x64x128xbf16, #tpu.memory_space<vmem>>, %arg3: memref<5x8x128xf32, #tpu.memory_space<vmem>>, %arg4: memref<64x128xf32, #tpu.memory_space<vmem>>, %arg5: memref<64x32xf32, #tpu.memory_space<vmem>>) attributes {dimension_semantics = [#tpu.dimension_semantics<parallel>], iteration_bounds = array<i64: 1>, scalar_prefetch = 0 : i64, scratch_operands = 1 : i64, tpu.core_type = #tpu.core_type<tc>, window_params = [{transform_indices = @transform_0, window_bounds = array<i64: 64, 64>}, {pipeline_mode = #tpu.pipeline_mode<synchronous>, transform_indices = @transform_1, window_bounds = array<i64: 5, 64, 128>}, {pipeline_mode = #tpu.pipeline_mode<synchronous>, transform_indices = @transform_2, window_bounds = array<i64: 5, 8, 128>}, {transform_indices = @transform_3, window_bounds = array<i64: 64, 128>}]} {
    %c0 = arith.constant 0 : index
    %c0_0 = arith.constant 0 : index
    %c0_1 = arith.constant 0 : index
    %0 = vector.load %arg2[%c0, %c0_0, %c0_1] : memref<5x64x128xbf16, #tpu.memory_space<vmem>>, vector<1x64x128xbf16>
    %1 = vector.shape_cast %0 : vector<1x64x128xbf16> to vector<64x128xbf16>
    %c1 = arith.constant 1 : index
    %c0_2 = arith.constant 0 : index
    %c0_3 = arith.constant 0 : index
    %2 = vector.load %arg2[%c1, %c0_2, %c0_3] : memref<5x64x128xbf16, #tpu.memory_space<vmem>>, vector<1x64x128xbf16>
    %3 = vector.shape_cast %2 : vector<1x64x128xbf16> to vector<64x128xbf16>
    %c2 = arith.constant 2 : index
    %c0_4 = arith.constant 0 : index
    %c0_5 = arith.constant 0 : index
    %4 = vector.load %arg2[%c2, %c0_4, %c0_5] : memref<5x64x128xbf16, #tpu.memory_space<vmem>>, vector<1x64x128xbf16>
    %5 = vector.shape_cast %4 : vector<1x64x128xbf16> to vector<64x128xbf16>
    %c4 = arith.constant 4 : index
    %c0_6 = arith.constant 0 : index
    %c0_7 = arith.constant 0 : index
    %6 = vector.load %arg2[%c4, %c0_6, %c0_7] : memref<5x64x128xbf16, #tpu.memory_space<vmem>>, vector<1x64x128xbf16>
    %7 = vector.shape_cast %6 : vector<1x64x128xbf16> to vector<64x128xbf16>
    %8 = vector.extract_strided_slice %7 {offsets = [0, 0], sizes = [32, 128], strides = [1, 1]} : vector<64x128xbf16> to vector<32x128xbf16>
    %c0_8 = arith.constant 0 : index
    %c0_9 = arith.constant 0 : index
    %c0_10 = arith.constant 0 : index
    %9 = vector.load %arg3[%c0_8, %c0_9, %c0_10] : memref<5x8x128xf32, #tpu.memory_space<vmem>>, vector<1x8x128xf32>
    %10 = vector.shape_cast %9 : vector<1x8x128xf32> to vector<8x128xf32>
    %c1_11 = arith.constant 1 : index
    %c0_12 = arith.constant 0 : index
    %c0_13 = arith.constant 0 : index
    %11 = vector.load %arg3[%c1_11, %c0_12, %c0_13] : memref<5x8x128xf32, #tpu.memory_space<vmem>>, vector<1x8x128xf32>
    %12 = vector.shape_cast %11 : vector<1x8x128xf32> to vector<8x128xf32>
    %c2_14 = arith.constant 2 : index
    %c0_15 = arith.constant 0 : index
    %c0_16 = arith.constant 0 : index
    %13 = vector.load %arg3[%c2_14, %c0_15, %c0_16] : memref<5x8x128xf32, #tpu.memory_space<vmem>>, vector<1x8x128xf32>
    %14 = vector.shape_cast %13 : vector<1x8x128xf32> to vector<8x128xf32>
    %c3 = arith.constant 3 : index
    %c0_17 = arith.constant 0 : index
    %c0_18 = arith.constant 0 : index
    %15 = vector.load %arg3[%c3, %c0_17, %c0_18] : memref<5x8x128xf32, #tpu.memory_space<vmem>>, vector<1x8x128xf32>
    %16 = vector.shape_cast %15 : vector<1x8x128xf32> to vector<8x128xf32>
    %17 = vector.extract_strided_slice %16 {offsets = [0, 0], sizes = [1, 32], strides = [1, 1]} : vector<8x128xf32> to vector<1x32xf32>
    %c4_19 = arith.constant 4 : index
    %c0_20 = arith.constant 0 : index
    %c0_21 = arith.constant 0 : index
    %18 = vector.load %arg3[%c4_19, %c0_20, %c0_21] : memref<5x8x128xf32, #tpu.memory_space<vmem>>, vector<1x8x128xf32>
    %19 = vector.shape_cast %18 : vector<1x8x128xf32> to vector<8x128xf32>
    %20 = vector.extract_strided_slice %19 {offsets = [0, 0], sizes = [1, 128], strides = [1, 1]} : vector<8x128xf32> to vector<1x128xf32>
    %c0_22 = arith.constant 0 : index
    %c0_23 = arith.constant 0 : index
    %21 = vector.load %arg1[%c0_22, %c0_23] : memref<64x64xbf16, #tpu.memory_space<vmem>>, vector<64x64xbf16>
    %c3_24 = arith.constant 3 : index
    %c0_25 = arith.constant 0 : index
    %c0_26 = arith.constant 0 : index
    %22 = vector.load %arg2[%c3_24, %c0_25, %c0_26] : memref<5x64x128xbf16, #tpu.memory_space<vmem>>, vector<1x64x128xbf16>
    %23 = vector.shape_cast %22 : vector<1x64x128xbf16> to vector<64x128xbf16>
    %cst = arith.constant dense<0.000000e+00> : vector<64x128xf32>
    %24 = tpu.matmul %21, %23, %cst {dimension_numbers = #tpu.dot_dimension_numbers<[1], [0], [0], [1], [0, 0, 1, 1], [], []>} : vector<64x64xbf16>, vector<64x128xbf16>, vector<64x128xf32> -> vector<64x128xf32>
    %25 = vector.extract_strided_slice %24 {offsets = [0, 0], sizes = [64, 32], strides = [1, 1]} : vector<64x128xf32> to vector<64x32xf32>
    %26 = vector.broadcast %17 : vector<1x32xf32> to vector<64x32xf32>
    %27 = arith.addf %25, %26 : vector<64x32xf32>
    %cst_27 = arith.constant 0.000000e+00 : f32
    %28 = vector.broadcast %cst_27 : f32 to vector<8x32xf32>
    %29 = vector.extract_strided_slice %27 {offsets = [0, 0], sizes = [8, 32], strides = [1, 1]} : vector<64x32xf32> to vector<8x32xf32>
    %30 = tpu.concatenate %29, %28 in 1 : vector<8x32xf32>, vector<8x32xf32> -> vector<8x64xf32>
    %31 = arith.truncf %30 : vector<8x64xf32> to vector<8x64xbf16>
    %cst_28 = arith.constant dense<0.000000e+00> : vector<8x128xf32>
    %32 = tpu.matmul %31, %1, %cst_28 {dimension_numbers = #tpu.dot_dimension_numbers<[1], [0], [0], [1], [0, 0, 1, 1], [], []>} : vector<8x64xbf16>, vector<64x128xbf16>, vector<8x128xf32> -> vector<8x128xf32>
    %33 = arith.addf %32, %10 : vector<8x128xf32>
    %34 = arith.negf %33 : vector<8x128xf32>
    %35 = math.exp %34 : vector<8x128xf32>
    %cst_29 = arith.constant 1.000000e+00 : f32
    %36 = vector.broadcast %cst_29 : f32 to vector<8x128xf32>
    %37 = arith.addf %36, %35 : vector<8x128xf32>
    %38 = arith.divf %36, %37 : vector<8x128xf32>
    %39 = math.tanh %33 : vector<8x128xf32>
    %40 = vector.extract_strided_slice %38 {offsets = [0, 0], sizes = [8, 32], strides = [1, 1]} : vector<8x128xf32> to vector<8x32xf32>
    %41 = vector.extract_strided_slice %38 {offsets = [0, 32], sizes = [8, 32], strides = [1, 1]} : vector<8x128xf32> to vector<8x32xf32>
    %42 = vector.extract_strided_slice %38 {offsets = [0, 96], sizes = [8, 32], strides = [1, 1]} : vector<8x128xf32> to vector<8x32xf32>
    %43 = vector.extract_strided_slice %39 {offsets = [0, 64], sizes = [8, 32], strides = [1, 1]} : vector<8x128xf32> to vector<8x32xf32>
    %44 = arith.mulf %41, %28 : vector<8x32xf32>
    %45 = arith.mulf %40, %43 : vector<8x32xf32>
    %46 = arith.addf %44, %45 : vector<8x32xf32>
    %47 = math.tanh %46 : vector<8x32xf32>
    %48 = arith.mulf %42, %47 : vector<8x32xf32>
    %49 = tpu.concatenate %48, %28 in 1 : vector<8x32xf32>, vector<8x32xf32> -> vector<8x64xf32>
    %50 = arith.truncf %49 : vector<8x64xf32> to vector<8x64xbf16>
    %cst_30 = arith.constant dense<0.000000e+00> : vector<8x128xf32>
    %51 = tpu.matmul %50, %3, %cst_30 {dimension_numbers = #tpu.dot_dimension_numbers<[1], [0], [0], [1], [0, 0, 1, 1], [], []>} : vector<8x64xbf16>, vector<64x128xbf16>, vector<8x128xf32> -> vector<8x128xf32>
    %52 = arith.addf %51, %12 : vector<8x128xf32>
    %53 = arith.negf %52 : vector<8x128xf32>
    %54 = math.exp %53 : vector<8x128xf32>
    %cst_31 = arith.constant 1.000000e+00 : f32
    %55 = vector.broadcast %cst_31 : f32 to vector<8x128xf32>
    %56 = arith.addf %55, %54 : vector<8x128xf32>
    %57 = arith.divf %55, %56 : vector<8x128xf32>
    %58 = math.tanh %52 : vector<8x128xf32>
    %59 = vector.extract_strided_slice %57 {offsets = [0, 0], sizes = [8, 32], strides = [1, 1]} : vector<8x128xf32> to vector<8x32xf32>
    %60 = vector.extract_strided_slice %57 {offsets = [0, 32], sizes = [8, 32], strides = [1, 1]} : vector<8x128xf32> to vector<8x32xf32>
    %61 = vector.extract_strided_slice %57 {offsets = [0, 96], sizes = [8, 32], strides = [1, 1]} : vector<8x128xf32> to vector<8x32xf32>
    %62 = vector.extract_strided_slice %58 {offsets = [0, 64], sizes = [8, 32], strides = [1, 1]} : vector<8x128xf32> to vector<8x32xf32>
    %63 = arith.mulf %60, %28 : vector<8x32xf32>
    %64 = arith.mulf %59, %62 : vector<8x32xf32>
    %65 = arith.addf %63, %64 : vector<8x32xf32>
    %66 = math.tanh %65 : vector<8x32xf32>
    %67 = arith.mulf %61, %66 : vector<8x32xf32>
    %68 = tpu.concatenate %67, %28 in 1 : vector<8x32xf32>, vector<8x32xf32> -> vector<8x64xf32>
    %69 = arith.truncf %68 : vector<8x64xf32> to vector<8x64xbf16>
    %cst_32 = arith.constant dense<0.000000e+00> : vector<8x128xf32>
    %70 = tpu.matmul %69, %5, %cst_32 {dimension_numbers = #tpu.dot_dimension_numbers<[1], [0], [0], [1], [0, 0, 1, 1], [], []>} : vector<8x64xbf16>, vector<64x128xbf16>, vector<8x128xf32> -> vector<8x128xf32>
    %71 = arith.addf %70, %14 : vector<8x128xf32>
    %72 = arith.negf %71 : vector<8x128xf32>
    %73 = math.exp %72 : vector<8x128xf32>
    %cst_33 = arith.constant 1.000000e+00 : f32
    %74 = vector.broadcast %cst_33 : f32 to vector<8x128xf32>
    %75 = arith.addf %74, %73 : vector<8x128xf32>
    %76 = arith.divf %74, %75 : vector<8x128xf32>
    %77 = math.tanh %71 : vector<8x128xf32>
    %78 = vector.extract_strided_slice %76 {offsets = [0, 0], sizes = [8, 32], strides = [1, 1]} : vector<8x128xf32> to vector<8x32xf32>
    %79 = vector.extract_strided_slice %77 {offsets = [0, 64], sizes = [8, 32], strides = [1, 1]} : vector<8x128xf32> to vector<8x32xf32>
    %80 = arith.mulf %78, %79 : vector<8x32xf32>
    %81 = vector.extract_strided_slice %76 {offsets = [0, 96], sizes = [8, 32], strides = [1, 1]} : vector<8x128xf32> to vector<8x32xf32>
    %82 = math.tanh %80 : vector<8x32xf32>
    %83 = arith.mulf %81, %82 : vector<8x32xf32>
    %c0_34 = arith.constant 0 : index
    %c0_35 = arith.constant 0 : index
    %84 = vector.load %arg5[%c0_34, %c0_35] : memref<64x32xf32, #tpu.memory_space<vmem>>, vector<8x32xf32>
    tpu.vector_store %arg5[%c0_34, %c0_35], %83 {strides = array<i32>} : memref<64x32xf32, #tpu.memory_space<vmem>>, vector<8x32xf32>,
    %85 = vector.extract_strided_slice %27 {offsets = [8, 0], sizes = [8, 32], strides = [1, 1]} : vector<64x32xf32> to vector<8x32xf32>
    %86 = tpu.concatenate %85, %48 in 1 : vector<8x32xf32>, vector<8x32xf32> -> vector<8x64xf32>
    %87 = arith.truncf %86 : vector<8x64xf32> to vector<8x64xbf16>
    %cst_36 = arith.constant dense<0.000000e+00> : vector<8x128xf32>
    %88 = tpu.matmul %87, %1, %cst_36 {dimension_numbers = #tpu.dot_dimension_numbers<[1], [0], [0], [1], [0, 0, 1, 1], [], []>} : vector<8x64xbf16>, vector<64x128xbf16>, vector<8x128xf32> -> vector<8x128xf32>
    %89 = arith.addf %88, %10 : vector<8x128xf32>
    %90 = arith.negf %89 : vector<8x128xf32>
    %91 = math.exp %90 : vector<8x128xf32>
    %cst_37 = arith.constant 1.000000e+00 : f32
    %92 = vector.broadcast %cst_37 : f32 to vector<8x128xf32>
    %93 = arith.addf %92, %91 : vector<8x128xf32>
    %94 = arith.divf %92, %93 : vector<8x128xf32>
    %95 = math.tanh %89 : vector<8x128xf32>
    %96 = vector.extract_strided_slice %94 {offsets = [0, 0], sizes = [8, 32], strides = [1, 1]} : vector<8x128xf32> to vector<8x32xf32>
    %97 = vector.extract_strided_slice %94 {offsets = [0, 32], sizes = [8, 32], strides = [1, 1]} : vector<8x128xf32> to vector<8x32xf32>
    %98 = vector.extract_strided_slice %94 {offsets = [0, 96], sizes = [8, 32], strides = [1, 1]} : vector<8x128xf32> to vector<8x32xf32>
    %99 = vector.extract_strided_slice %95 {offsets = [0, 64], sizes = [8, 32], strides = [1, 1]} : vector<8x128xf32> to vector<8x32xf32>
    %100 = arith.mulf %97, %46 : vector<8x32xf32>
    %101 = arith.mulf %96, %99 : vector<8x32xf32>
    %102 = arith.addf %100, %101 : vector<8x32xf32>
    %103 = math.tanh %102 : vector<8x32xf32>
    %104 = arith.mulf %98, %103 : vector<8x32xf32>
    %105 = tpu.concatenate %104, %67 in 1 : vector<8x32xf32>, vector<8x32xf32> -> vector<8x64xf32>
    %106 = arith.truncf %105 : vector<8x64xf32> to vector<8x64xbf16>
    %cst_38 = arith.constant dense<0.000000e+00> : vector<8x128xf32>
    %107 = tpu.matmul %106, %3, %cst_38 {dimension_numbers = #tpu.dot_dimension_numbers<[1], [0], [0], [1], [0, 0, 1, 1], [], []>} : vector<8x64xbf16>, vector<64x128xbf16>, vector<8x128xf32> -> vector<8x128xf32>
    %108 = arith.addf %107, %12 : vector<8x128xf32>
    %109 = arith.negf %108 : vector<8x128xf32>
    %110 = math.exp %109 : vector<8x128xf32>
    %cst_39 = arith.constant 1.000000e+00 : f32
    %111 = vector.broadcast %cst_39 : f32 to vector<8x128xf32>
    %112 = arith.addf %111, %110 : vector<8x128xf32>
    %113 = arith.divf %111, %112 : vector<8x128xf32>
    %114 = math.tanh %108 : vector<8x128xf32>
    %115 = vector.extract_strided_slice %113 {offsets = [0, 0], sizes = [8, 32], strides = [1, 1]} : vector<8x128xf32> to vector<8x32xf32>
    %116 = vector.extract_strided_slice %113 {offsets = [0, 32], sizes = [8, 32], strides = [1, 1]} : vector<8x128xf32> to vector<8x32xf32>
    %117 = vector.extract_strided_slice %113 {offsets = [0, 96], sizes = [8, 32], strides = [1, 1]} : vector<8x128xf32> to vector<8x32xf32>
    %118 = vector.extract_strided_slice %114 {offsets = [0, 64], sizes = [8, 32], strides = [1, 1]} : vector<8x128xf32> to vector<8x32xf32>
    %119 = arith.mulf %116, %80 : vector<8x32xf32>
    %120 = arith.mulf %115, %118 : vector<8x32xf32>
    %121 = arith.addf %119, %120 : vector<8x32xf32>
    %122 = math.tanh %121 : vector<8x32xf32>
    %123 = arith.mulf %117, %122 : vector<8x32xf32>
    %124 = tpu.concatenate %123, %83 in 1 : vector<8x32xf32>, vector<8x32xf32> -> vector<8x64xf32>
    %125 = arith.truncf %124 : vector<8x64xf32> to vector<8x64xbf16>
    %cst_40 = arith.constant dense<0.000000e+00> : vector<8x128xf32>
    %126 = tpu.matmul %125, %5, %cst_40 {dimension_numbers = #tpu.dot_dimension_numbers<[1], [0], [0], [1], [0, 0, 1, 1], [], []>} : vector<8x64xbf16>, vector<64x128xbf16>, vector<8x128xf32> -> vector<8x128xf32>
    %127 = arith.addf %126, %14 : vector<8x128xf32>
    %128 = arith.negf %127 : vector<8x128xf32>
    %129 = math.exp %128 : vector<8x128xf32>
    %cst_41 = arith.constant 1.000000e+00 : f32
    %130 = vector.broadcast %cst_41 : f32 to vector<8x128xf32>
    %131 = arith.addf %130, %129 : vector<8x128xf32>
    %132 = arith.divf %130, %131 : vector<8x128xf32>
    %133 = math.tanh %127 : vector<8x128xf32>
    %134 = vector.extract_strided_slice %132 {offsets = [0, 0], sizes = [8, 32], strides = [1, 1]} : vector<8x128xf32> to vector<8x32xf32>
    %135 = vector.extract_strided_slice %133 {offsets = [0, 64], sizes = [8, 32], strides = [1, 1]} : vector<8x128xf32> to vector<8x32xf32>
    %136 = arith.mulf %134, %135 : vector<8x32xf32>
    %137 = vector.extract_strided_slice %132 {offsets = [0, 96], sizes = [8, 32], strides = [1, 1]} : vector<8x128xf32> to vector<8x32xf32>
    %138 = math.tanh %136 : vector<8x32xf32>
    %139 = arith.mulf %137, %138 : vector<8x32xf32>
    %c8 = arith.constant 8 : index
    %c0_42 = arith.constant 0 : index
    %140 = vector.load %arg5[%c8, %c0_42] : memref<64x32xf32, #tpu.memory_space<vmem>>, vector<8x32xf32>
    tpu.vector_store %arg5[%c8, %c0_42], %139 {strides = array<i32>} : memref<64x32xf32, #tpu.memory_space<vmem>>, vector<8x32xf32>,
    %141 = vector.extract_strided_slice %27 {offsets = [16, 0], sizes = [8, 32], strides = [1, 1]} : vector<64x32xf32> to vector<8x32xf32>
    %142 = tpu.concatenate %141, %104 in 1 : vector<8x32xf32>, vector<8x32xf32> -> vector<8x64xf32>
    %143 = arith.truncf %142 : vector<8x64xf32> to vector<8x64xbf16>
    %cst_43 = arith.constant dense<0.000000e+00> : vector<8x128xf32>
    %144 = tpu.matmul %143, %1, %cst_43 {dimension_numbers = #tpu.dot_dimension_numbers<[1], [0], [0], [1], [0, 0, 1, 1], [], []>} : vector<8x64xbf16>, vector<64x128xbf16>, vector<8x128xf32> -> vector<8x128xf32>
    %145 = arith.addf %144, %10 : vector<8x128xf32>
    %146 = arith.negf %145 : vector<8x128xf32>
    %147 = math.exp %146 : vector<8x128xf32>
    %cst_44 = arith.constant 1.000000e+00 : f32
    %148 = vector.broadcast %cst_44 : f32 to vector<8x128xf32>
    %149 = arith.addf %148, %147 : vector<8x128xf32>
    %150 = arith.divf %148, %149 : vector<8x128xf32>
    %151 = math.tanh %145 : vector<8x128xf32>
    %152 = vector.extract_strided_slice %150 {offsets = [0, 0], sizes = [8, 32], strides = [1, 1]} : vector<8x128xf32> to vector<8x32xf32>
    %153 = vector.extract_strided_slice %150 {offsets = [0, 32], sizes = [8, 32], strides = [1, 1]} : vector<8x128xf32> to vector<8x32xf32>
    %154 = vector.extract_strided_slice %150 {offsets = [0, 96], sizes = [8, 32], strides = [1, 1]} : vector<8x128xf32> to vector<8x32xf32>
    %155 = vector.extract_strided_slice %151 {offsets = [0, 64], sizes = [8, 32], strides = [1, 1]} : vector<8x128xf32> to vector<8x32xf32>
    %156 = arith.mulf %153, %102 : vector<8x32xf32>
    %157 = arith.mulf %152, %155 : vector<8x32xf32>
    %158 = arith.addf %156, %157 : vector<8x32xf32>
    %159 = math.tanh %158 : vector<8x32xf32>
    %160 = arith.mulf %154, %159 : vector<8x32xf32>
    %161 = tpu.concatenate %160, %123 in 1 : vector<8x32xf32>, vector<8x32xf32> -> vector<8x64xf32>
    %162 = arith.truncf %161 : vector<8x64xf32> to vector<8x64xbf16>
    %cst_45 = arith.constant dense<0.000000e+00> : vector<8x128xf32>
    %163 = tpu.matmul %162, %3, %cst_45 {dimension_numbers = #tpu.dot_dimension_numbers<[1], [0], [0], [1], [0, 0, 1, 1], [], []>} : vector<8x64xbf16>, vector<64x128xbf16>, vector<8x128xf32> -> vector<8x128xf32>
    %164 = arith.addf %163, %12 : vector<8x128xf32>
    %165 = arith.negf %164 : vector<8x128xf32>
    %166 = math.exp %165 : vector<8x128xf32>
    %cst_46 = arith.constant 1.000000e+00 : f32
    %167 = vector.broadcast %cst_46 : f32 to vector<8x128xf32>
    %168 = arith.addf %167, %166 : vector<8x128xf32>
    %169 = arith.divf %167, %168 : vector<8x128xf32>
    %170 = math.tanh %164 : vector<8x128xf32>
    %171 = vector.extract_strided_slice %169 {offsets = [0, 0], sizes = [8, 32], strides = [1, 1]} : vector<8x128xf32> to vector<8x32xf32>
    %172 = vector.extract_strided_slice %169 {offsets = [0, 32], sizes = [8, 32], strides = [1, 1]} : vector<8x128xf32> to vector<8x32xf32>
    %173 = vector.extract_strided_slice %169 {offsets = [0, 96], sizes = [8, 32], strides = [1, 1]} : vector<8x128xf32> to vector<8x32xf32>
    %174 = vector.extract_strided_slice %170 {offsets = [0, 64], sizes = [8, 32], strides = [1, 1]} : vector<8x128xf32> to vector<8x32xf32>
    %175 = arith.mulf %172, %136 : vector<8x32xf32>
    %176 = arith.mulf %171, %174 : vector<8x32xf32>
    %177 = arith.addf %175, %176 : vector<8x32xf32>
    %178 = math.tanh %177 : vector<8x32xf32>
    %179 = arith.mulf %173, %178 : vector<8x32xf32>
    %180 = tpu.concatenate %179, %139 in 1 : vector<8x32xf32>, vector<8x32xf32> -> vector<8x64xf32>
    %181 = arith.truncf %180 : vector<8x64xf32> to vector<8x64xbf16>
    %cst_47 = arith.constant dense<0.000000e+00> : vector<8x128xf32>
    %182 = tpu.matmul %181, %5, %cst_47 {dimension_numbers = #tpu.dot_dimension_numbers<[1], [0], [0], [1], [0, 0, 1, 1], [], []>} : vector<8x64xbf16>, vector<64x128xbf16>, vector<8x128xf32> -> vector<8x128xf32>
    %183 = arith.addf %182, %14 : vector<8x128xf32>
    %184 = arith.negf %183 : vector<8x128xf32>
    %185 = math.exp %184 : vector<8x128xf32>
    %cst_48 = arith.constant 1.000000e+00 : f32
    %186 = vector.broadcast %cst_48 : f32 to vector<8x128xf32>
    %187 = arith.addf %186, %185 : vector<8x128xf32>
    %188 = arith.divf %186, %187 : vector<8x128xf32>
    %189 = math.tanh %183 : vector<8x128xf32>
    %190 = vector.extract_strided_slice %188 {offsets = [0, 0], sizes = [8, 32], strides = [1, 1]} : vector<8x128xf32> to vector<8x32xf32>
    %191 = vector.extract_strided_slice %189 {offsets = [0, 64], sizes = [8, 32], strides = [1, 1]} : vector<8x128xf32> to vector<8x32xf32>
    %192 = arith.mulf %190, %191 : vector<8x32xf32>
    %193 = vector.extract_strided_slice %188 {offsets = [0, 96], sizes = [8, 32], strides = [1, 1]} : vector<8x128xf32> to vector<8x32xf32>
    %194 = math.tanh %192 : vector<8x32xf32>
    %195 = arith.mulf %193, %194 : vector<8x32xf32>
    %c16 = arith.constant 16 : index
    %c0_49 = arith.constant 0 : index
    %196 = vector.load %arg5[%c16, %c0_49] : memref<64x32xf32, #tpu.memory_space<vmem>>, vector<8x32xf32>
    tpu.vector_store %arg5[%c16, %c0_49], %195 {strides = array<i32>} : memref<64x32xf32, #tpu.memory_space<vmem>>, vector<8x32xf32>,
    %197 = vector.extract_strided_slice %27 {offsets = [24, 0], sizes = [8, 32], strides = [1, 1]} : vector<64x32xf32> to vector<8x32xf32>
    %198 = tpu.concatenate %197, %160 in 1 : vector<8x32xf32>, vector<8x32xf32> -> vector<8x64xf32>
    %199 = arith.truncf %198 : vector<8x64xf32> to vector<8x64xbf16>
    %cst_50 = arith.constant dense<0.000000e+00> : vector<8x128xf32>
    %200 = tpu.matmul %199, %1, %cst_50 {dimension_numbers = #tpu.dot_dimension_numbers<[1], [0], [0], [1], [0, 0, 1, 1], [], []>} : vector<8x64xbf16>, vector<64x128xbf16>, vector<8x128xf32> -> vector<8x128xf32>
    %201 = arith.addf %200, %10 : vector<8x128xf32>
    %202 = arith.negf %201 : vector<8x128xf32>
    %203 = math.exp %202 : vector<8x128xf32>
    %cst_51 = arith.constant 1.000000e+00 : f32
    %204 = vector.broadcast %cst_51 : f32 to vector<8x128xf32>
    %205 = arith.addf %204, %203 : vector<8x128xf32>
    %206 = arith.divf %204, %205 : vector<8x128xf32>
    %207 = math.tanh %201 : vector<8x128xf32>
    %208 = vector.extract_strided_slice %206 {offsets = [0, 0], sizes = [8, 32], strides = [1, 1]} : vector<8x128xf32> to vector<8x32xf32>
    %209 = vector.extract_strided_slice %206 {offsets = [0, 32], sizes = [8, 32], strides = [1, 1]} : vector<8x128xf32> to vector<8x32xf32>
    %210 = vector.extract_strided_slice %206 {offsets = [0, 96], sizes = [8, 32], strides = [1, 1]} : vector<8x128xf32> to vector<8x32xf32>
    %211 = vector.extract_strided_slice %207 {offsets = [0, 64], sizes = [8, 32], strides = [1, 1]} : vector<8x128xf32> to vector<8x32xf32>
    %212 = arith.mulf %209, %158 : vector<8x32xf32>
    %213 = arith.mulf %208, %211 : vector<8x32xf32>
    %214 = arith.addf %212, %213 : vector<8x32xf32>
    %215 = math.tanh %214 : vector<8x32xf32>
    %216 = arith.mulf %210, %215 : vector<8x32xf32>
    %217 = tpu.concatenate %216, %179 in 1 : vector<8x32xf32>, vector<8x32xf32> -> vector<8x64xf32>
    %218 = arith.truncf %217 : vector<8x64xf32> to vector<8x64xbf16>
    %cst_52 = arith.constant dense<0.000000e+00> : vector<8x128xf32>
    %219 = tpu.matmul %218, %3, %cst_52 {dimension_numbers = #tpu.dot_dimension_numbers<[1], [0], [0], [1], [0, 0, 1, 1], [], []>} : vector<8x64xbf16>, vector<64x128xbf16>, vector<8x128xf32> -> vector<8x128xf32>
    %220 = arith.addf %219, %12 : vector<8x128xf32>
    %221 = arith.negf %220 : vector<8x128xf32>
    %222 = math.exp %221 : vector<8x128xf32>
    %cst_53 = arith.constant 1.000000e+00 : f32
    %223 = vector.broadcast %cst_53 : f32 to vector<8x128xf32>
    %224 = arith.addf %223, %222 : vector<8x128xf32>
    %225 = arith.divf %223, %224 : vector<8x128xf32>
    %226 = math.tanh %220 : vector<8x128xf32>
    %227 = vector.extract_strided_slice %225 {offsets = [0, 0], sizes = [8, 32], strides = [1, 1]} : vector<8x128xf32> to vector<8x32xf32>
    %228 = vector.extract_strided_slice %225 {offsets = [0, 32], sizes = [8, 32], strides = [1, 1]} : vector<8x128xf32> to vector<8x32xf32>
    %229 = vector.extract_strided_slice %225 {offsets = [0, 96], sizes = [8, 32], strides = [1, 1]} : vector<8x128xf32> to vector<8x32xf32>
    %230 = vector.extract_strided_slice %226 {offsets = [0, 64], sizes = [8, 32], strides = [1, 1]} : vector<8x128xf32> to vector<8x32xf32>
    %231 = arith.mulf %228, %192 : vector<8x32xf32>
    %232 = arith.mulf %227, %230 : vector<8x32xf32>
    %233 = arith.addf %231, %232 : vector<8x32xf32>
    %234 = math.tanh %233 : vector<8x32xf32>
    %235 = arith.mulf %229, %234 : vector<8x32xf32>
    %236 = tpu.concatenate %235, %195 in 1 : vector<8x32xf32>, vector<8x32xf32> -> vector<8x64xf32>
    %237 = arith.truncf %236 : vector<8x64xf32> to vector<8x64xbf16>
    %cst_54 = arith.constant dense<0.000000e+00> : vector<8x128xf32>
    %238 = tpu.matmul %237, %5, %cst_54 {dimension_numbers = #tpu.dot_dimension_numbers<[1], [0], [0], [1], [0, 0, 1, 1], [], []>} : vector<8x64xbf16>, vector<64x128xbf16>, vector<8x128xf32> -> vector<8x128xf32>
    %239 = arith.addf %238, %14 : vector<8x128xf32>
    %240 = arith.negf %239 : vector<8x128xf32>
    %241 = math.exp %240 : vector<8x128xf32>
    %cst_55 = arith.constant 1.000000e+00 : f32
    %242 = vector.broadcast %cst_55 : f32 to vector<8x128xf32>
    %243 = arith.addf %242, %241 : vector<8x128xf32>
    %244 = arith.divf %242, %243 : vector<8x128xf32>
    %245 = math.tanh %239 : vector<8x128xf32>
    %246 = vector.extract_strided_slice %244 {offsets = [0, 0], sizes = [8, 32], strides = [1, 1]} : vector<8x128xf32> to vector<8x32xf32>
    %247 = vector.extract_strided_slice %245 {offsets = [0, 64], sizes = [8, 32], strides = [1, 1]} : vector<8x128xf32> to vector<8x32xf32>
    %248 = arith.mulf %246, %247 : vector<8x32xf32>
    %249 = vector.extract_strided_slice %244 {offsets = [0, 96], sizes = [8, 32], strides = [1, 1]} : vector<8x128xf32> to vector<8x32xf32>
    %250 = math.tanh %248 : vector<8x32xf32>
    %251 = arith.mulf %249, %250 : vector<8x32xf32>
    %c24 = arith.constant 24 : index
    %c0_56 = arith.constant 0 : index
    %252 = vector.load %arg5[%c24, %c0_56] : memref<64x32xf32, #tpu.memory_space<vmem>>, vector<8x32xf32>
    tpu.vector_store %arg5[%c24, %c0_56], %251 {strides = array<i32>} : memref<64x32xf32, #tpu.memory_space<vmem>>, vector<8x32xf32>,
    %253 = vector.extract_strided_slice %27 {offsets = [32, 0], sizes = [8, 32], strides = [1, 1]} : vector<64x32xf32> to vector<8x32xf32>
    %254 = tpu.concatenate %253, %216 in 1 : vector<8x32xf32>, vector<8x32xf32> -> vector<8x64xf32>
    %255 = arith.truncf %254 : vector<8x64xf32> to vector<8x64xbf16>
    %cst_57 = arith.constant dense<0.000000e+00> : vector<8x128xf32>
    %256 = tpu.matmul %255, %1, %cst_57 {dimension_numbers = #tpu.dot_dimension_numbers<[1], [0], [0], [1], [0, 0, 1, 1], [], []>} : vector<8x64xbf16>, vector<64x128xbf16>, vector<8x128xf32> -> vector<8x128xf32>
    %257 = arith.addf %256, %10 : vector<8x128xf32>
    %258 = arith.negf %257 : vector<8x128xf32>
    %259 = math.exp %258 : vector<8x128xf32>
    %cst_58 = arith.constant 1.000000e+00 : f32
    %260 = vector.broadcast %cst_58 : f32 to vector<8x128xf32>
    %261 = arith.addf %260, %259 : vector<8x128xf32>
    %262 = arith.divf %260, %261 : vector<8x128xf32>
    %263 = math.tanh %257 : vector<8x128xf32>
    %264 = vector.extract_strided_slice %262 {offsets = [0, 0], sizes = [8, 32], strides = [1, 1]} : vector<8x128xf32> to vector<8x32xf32>
    %265 = vector.extract_strided_slice %262 {offsets = [0, 32], sizes = [8, 32], strides = [1, 1]} : vector<8x128xf32> to vector<8x32xf32>
    %266 = vector.extract_strided_slice %262 {offsets = [0, 96], sizes = [8, 32], strides = [1, 1]} : vector<8x128xf32> to vector<8x32xf32>
    %267 = vector.extract_strided_slice %263 {offsets = [0, 64], sizes = [8, 32], strides = [1, 1]} : vector<8x128xf32> to vector<8x32xf32>
    %268 = arith.mulf %265, %214 : vector<8x32xf32>
    %269 = arith.mulf %264, %267 : vector<8x32xf32>
    %270 = arith.addf %268, %269 : vector<8x32xf32>
    %271 = math.tanh %270 : vector<8x32xf32>
    %272 = arith.mulf %266, %271 : vector<8x32xf32>
    %273 = tpu.concatenate %272, %235 in 1 : vector<8x32xf32>, vector<8x32xf32> -> vector<8x64xf32>
    %274 = arith.truncf %273 : vector<8x64xf32> to vector<8x64xbf16>
    %cst_59 = arith.constant dense<0.000000e+00> : vector<8x128xf32>
    %275 = tpu.matmul %274, %3, %cst_59 {dimension_numbers = #tpu.dot_dimension_numbers<[1], [0], [0], [1], [0, 0, 1, 1], [], []>} : vector<8x64xbf16>, vector<64x128xbf16>, vector<8x128xf32> -> vector<8x128xf32>
    %276 = arith.addf %275, %12 : vector<8x128xf32>
    %277 = arith.negf %276 : vector<8x128xf32>
    %278 = math.exp %277 : vector<8x128xf32>
    %cst_60 = arith.constant 1.000000e+00 : f32
    %279 = vector.broadcast %cst_60 : f32 to vector<8x128xf32>
    %280 = arith.addf %279, %278 : vector<8x128xf32>
    %281 = arith.divf %279, %280 : vector<8x128xf32>
    %282 = math.tanh %276 : vector<8x128xf32>
    %283 = vector.extract_strided_slice %281 {offsets = [0, 0], sizes = [8, 32], strides = [1, 1]} : vector<8x128xf32> to vector<8x32xf32>
    %284 = vector.extract_strided_slice %281 {offsets = [0, 32], sizes = [8, 32], strides = [1, 1]} : vector<8x128xf32> to vector<8x32xf32>
    %285 = vector.extract_strided_slice %281 {offsets = [0, 96], sizes = [8, 32], strides = [1, 1]} : vector<8x128xf32> to vector<8x32xf32>
    %286 = vector.extract_strided_slice %282 {offsets = [0, 64], sizes = [8, 32], strides = [1, 1]} : vector<8x128xf32> to vector<8x32xf32>
    %287 = arith.mulf %284, %248 : vector<8x32xf32>
    %288 = arith.mulf %283, %286 : vector<8x32xf32>
    %289 = arith.addf %287, %288 : vector<8x32xf32>
    %290 = math.tanh %289 : vector<8x32xf32>
    %291 = arith.mulf %285, %290 : vector<8x32xf32>
    %292 = tpu.concatenate %291, %251 in 1 : vector<8x32xf32>, vector<8x32xf32> -> vector<8x64xf32>
    %293 = arith.truncf %292 : vector<8x64xf32> to vector<8x64xbf16>
    %cst_61 = arith.constant dense<0.000000e+00> : vector<8x128xf32>
    %294 = tpu.matmul %293, %5, %cst_61 {dimension_numbers = #tpu.dot_dimension_numbers<[1], [0], [0], [1], [0, 0, 1, 1], [], []>} : vector<8x64xbf16>, vector<64x128xbf16>, vector<8x128xf32> -> vector<8x128xf32>
    %295 = arith.addf %294, %14 : vector<8x128xf32>
    %296 = arith.negf %295 : vector<8x128xf32>
    %297 = math.exp %296 : vector<8x128xf32>
    %cst_62 = arith.constant 1.000000e+00 : f32
    %298 = vector.broadcast %cst_62 : f32 to vector<8x128xf32>
    %299 = arith.addf %298, %297 : vector<8x128xf32>
    %300 = arith.divf %298, %299 : vector<8x128xf32>
    %301 = math.tanh %295 : vector<8x128xf32>
    %302 = vector.extract_strided_slice %300 {offsets = [0, 0], sizes = [8, 32], strides = [1, 1]} : vector<8x128xf32> to vector<8x32xf32>
    %303 = vector.extract_strided_slice %301 {offsets = [0, 64], sizes = [8, 32], strides = [1, 1]} : vector<8x128xf32> to vector<8x32xf32>
    %304 = arith.mulf %302, %303 : vector<8x32xf32>
    %305 = vector.extract_strided_slice %300 {offsets = [0, 96], sizes = [8, 32], strides = [1, 1]} : vector<8x128xf32> to vector<8x32xf32>
    %306 = math.tanh %304 : vector<8x32xf32>
    %307 = arith.mulf %305, %306 : vector<8x32xf32>
    %c32 = arith.constant 32 : index
    %c0_63 = arith.constant 0 : index
    %308 = vector.load %arg5[%c32, %c0_63] : memref<64x32xf32, #tpu.memory_space<vmem>>, vector<8x32xf32>
    tpu.vector_store %arg5[%c32, %c0_63], %307 {strides = array<i32>} : memref<64x32xf32, #tpu.memory_space<vmem>>, vector<8x32xf32>,
    %309 = vector.extract_strided_slice %27 {offsets = [40, 0], sizes = [8, 32], strides = [1, 1]} : vector<64x32xf32> to vector<8x32xf32>
    %310 = tpu.concatenate %309, %272 in 1 : vector<8x32xf32>, vector<8x32xf32> -> vector<8x64xf32>
    %311 = arith.truncf %310 : vector<8x64xf32> to vector<8x64xbf16>
    %cst_64 = arith.constant dense<0.000000e+00> : vector<8x128xf32>
    %312 = tpu.matmul %311, %1, %cst_64 {dimension_numbers = #tpu.dot_dimension_numbers<[1], [0], [0], [1], [0, 0, 1, 1], [], []>} : vector<8x64xbf16>, vector<64x128xbf16>, vector<8x128xf32> -> vector<8x128xf32>
    %313 = arith.addf %312, %10 : vector<8x128xf32>
    %314 = arith.negf %313 : vector<8x128xf32>
    %315 = math.exp %314 : vector<8x128xf32>
    %cst_65 = arith.constant 1.000000e+00 : f32
    %316 = vector.broadcast %cst_65 : f32 to vector<8x128xf32>
    %317 = arith.addf %316, %315 : vector<8x128xf32>
    %318 = arith.divf %316, %317 : vector<8x128xf32>
    %319 = math.tanh %313 : vector<8x128xf32>
    %320 = vector.extract_strided_slice %318 {offsets = [0, 0], sizes = [8, 32], strides = [1, 1]} : vector<8x128xf32> to vector<8x32xf32>
    %321 = vector.extract_strided_slice %318 {offsets = [0, 32], sizes = [8, 32], strides = [1, 1]} : vector<8x128xf32> to vector<8x32xf32>
    %322 = vector.extract_strided_slice %318 {offsets = [0, 96], sizes = [8, 32], strides = [1, 1]} : vector<8x128xf32> to vector<8x32xf32>
    %323 = vector.extract_strided_slice %319 {offsets = [0, 64], sizes = [8, 32], strides = [1, 1]} : vector<8x128xf32> to vector<8x32xf32>
    %324 = arith.mulf %321, %270 : vector<8x32xf32>
    %325 = arith.mulf %320, %323 : vector<8x32xf32>
    %326 = arith.addf %324, %325 : vector<8x32xf32>
    %327 = math.tanh %326 : vector<8x32xf32>
    %328 = arith.mulf %322, %327 : vector<8x32xf32>
    %329 = tpu.concatenate %328, %291 in 1 : vector<8x32xf32>, vector<8x32xf32> -> vector<8x64xf32>
    %330 = arith.truncf %329 : vector<8x64xf32> to vector<8x64xbf16>
    %cst_66 = arith.constant dense<0.000000e+00> : vector<8x128xf32>
    %331 = tpu.matmul %330, %3, %cst_66 {dimension_numbers = #tpu.dot_dimension_numbers<[1], [0], [0], [1], [0, 0, 1, 1], [], []>} : vector<8x64xbf16>, vector<64x128xbf16>, vector<8x128xf32> -> vector<8x128xf32>
    %332 = arith.addf %331, %12 : vector<8x128xf32>
    %333 = arith.negf %332 : vector<8x128xf32>
    %334 = math.exp %333 : vector<8x128xf32>
    %cst_67 = arith.constant 1.000000e+00 : f32
    %335 = vector.broadcast %cst_67 : f32 to vector<8x128xf32>
    %336 = arith.addf %335, %334 : vector<8x128xf32>
    %337 = arith.divf %335, %336 : vector<8x128xf32>
    %338 = math.tanh %332 : vector<8x128xf32>
    %339 = vector.extract_strided_slice %337 {offsets = [0, 0], sizes = [8, 32], strides = [1, 1]} : vector<8x128xf32> to vector<8x32xf32>
    %340 = vector.extract_strided_slice %337 {offsets = [0, 32], sizes = [8, 32], strides = [1, 1]} : vector<8x128xf32> to vector<8x32xf32>
    %341 = vector.extract_strided_slice %337 {offsets = [0, 96], sizes = [8, 32], strides = [1, 1]} : vector<8x128xf32> to vector<8x32xf32>
    %342 = vector.extract_strided_slice %338 {offsets = [0, 64], sizes = [8, 32], strides = [1, 1]} : vector<8x128xf32> to vector<8x32xf32>
    %343 = arith.mulf %340, %304 : vector<8x32xf32>
    %344 = arith.mulf %339, %342 : vector<8x32xf32>
    %345 = arith.addf %343, %344 : vector<8x32xf32>
    %346 = math.tanh %345 : vector<8x32xf32>
    %347 = arith.mulf %341, %346 : vector<8x32xf32>
    %348 = tpu.concatenate %347, %307 in 1 : vector<8x32xf32>, vector<8x32xf32> -> vector<8x64xf32>
    %349 = arith.truncf %348 : vector<8x64xf32> to vector<8x64xbf16>
    %cst_68 = arith.constant dense<0.000000e+00> : vector<8x128xf32>
    %350 = tpu.matmul %349, %5, %cst_68 {dimension_numbers = #tpu.dot_dimension_numbers<[1], [0], [0], [1], [0, 0, 1, 1], [], []>} : vector<8x64xbf16>, vector<64x128xbf16>, vector<8x128xf32> -> vector<8x128xf32>
    %351 = arith.addf %350, %14 : vector<8x128xf32>
    %352 = arith.negf %351 : vector<8x128xf32>
    %353 = math.exp %352 : vector<8x128xf32>
    %cst_69 = arith.constant 1.000000e+00 : f32
    %354 = vector.broadcast %cst_69 : f32 to vector<8x128xf32>
    %355 = arith.addf %354, %353 : vector<8x128xf32>
    %356 = arith.divf %354, %355 : vector<8x128xf32>
    %357 = math.tanh %351 : vector<8x128xf32>
    %358 = vector.extract_strided_slice %356 {offsets = [0, 0], sizes = [8, 32], strides = [1, 1]} : vector<8x128xf32> to vector<8x32xf32>
    %359 = vector.extract_strided_slice %357 {offsets = [0, 64], sizes = [8, 32], strides = [1, 1]} : vector<8x128xf32> to vector<8x32xf32>
    %360 = arith.mulf %358, %359 : vector<8x32xf32>
    %361 = vector.extract_strided_slice %356 {offsets = [0, 96], sizes = [8, 32], strides = [1, 1]} : vector<8x128xf32> to vector<8x32xf32>
    %362 = math.tanh %360 : vector<8x32xf32>
    %363 = arith.mulf %361, %362 : vector<8x32xf32>
    %c40 = arith.constant 40 : index
    %c0_70 = arith.constant 0 : index
    %364 = vector.load %arg5[%c40, %c0_70] : memref<64x32xf32, #tpu.memory_space<vmem>>, vector<8x32xf32>
    tpu.vector_store %arg5[%c40, %c0_70], %363 {strides = array<i32>} : memref<64x32xf32, #tpu.memory_space<vmem>>, vector<8x32xf32>,
    %365 = vector.extract_strided_slice %27 {offsets = [48, 0], sizes = [8, 32], strides = [1, 1]} : vector<64x32xf32> to vector<8x32xf32>
    %366 = tpu.concatenate %365, %328 in 1 : vector<8x32xf32>, vector<8x32xf32> -> vector<8x64xf32>
    %367 = arith.truncf %366 : vector<8x64xf32> to vector<8x64xbf16>
    %cst_71 = arith.constant dense<0.000000e+00> : vector<8x128xf32>
    %368 = tpu.matmul %367, %1, %cst_71 {dimension_numbers = #tpu.dot_dimension_numbers<[1], [0], [0], [1], [0, 0, 1, 1], [], []>} : vector<8x64xbf16>, vector<64x128xbf16>, vector<8x128xf32> -> vector<8x128xf32>
    %369 = arith.addf %368, %10 : vector<8x128xf32>
    %370 = arith.negf %369 : vector<8x128xf32>
    %371 = math.exp %370 : vector<8x128xf32>
    %cst_72 = arith.constant 1.000000e+00 : f32
    %372 = vector.broadcast %cst_72 : f32 to vector<8x128xf32>
    %373 = arith.addf %372, %371 : vector<8x128xf32>
    %374 = arith.divf %372, %373 : vector<8x128xf32>
    %375 = math.tanh %369 : vector<8x128xf32>
    %376 = vector.extract_strided_slice %374 {offsets = [0, 0], sizes = [8, 32], strides = [1, 1]} : vector<8x128xf32> to vector<8x32xf32>
    %377 = vector.extract_strided_slice %374 {offsets = [0, 32], sizes = [8, 32], strides = [1, 1]} : vector<8x128xf32> to vector<8x32xf32>
    %378 = vector.extract_strided_slice %374 {offsets = [0, 96], sizes = [8, 32], strides = [1, 1]} : vector<8x128xf32> to vector<8x32xf32>
    %379 = vector.extract_strided_slice %375 {offsets = [0, 64], sizes = [8, 32], strides = [1, 1]} : vector<8x128xf32> to vector<8x32xf32>
    %380 = arith.mulf %377, %326 : vector<8x32xf32>
    %381 = arith.mulf %376, %379 : vector<8x32xf32>
    %382 = arith.addf %380, %381 : vector<8x32xf32>
    %383 = math.tanh %382 : vector<8x32xf32>
    %384 = arith.mulf %378, %383 : vector<8x32xf32>
    %385 = tpu.concatenate %384, %347 in 1 : vector<8x32xf32>, vector<8x32xf32> -> vector<8x64xf32>
    %386 = arith.truncf %385 : vector<8x64xf32> to vector<8x64xbf16>
    %cst_73 = arith.constant dense<0.000000e+00> : vector<8x128xf32>
    %387 = tpu.matmul %386, %3, %cst_73 {dimension_numbers = #tpu.dot_dimension_numbers<[1], [0], [0], [1], [0, 0, 1, 1], [], []>} : vector<8x64xbf16>, vector<64x128xbf16>, vector<8x128xf32> -> vector<8x128xf32>
    %388 = arith.addf %387, %12 : vector<8x128xf32>
    %389 = arith.negf %388 : vector<8x128xf32>
    %390 = math.exp %389 : vector<8x128xf32>
    %cst_74 = arith.constant 1.000000e+00 : f32
    %391 = vector.broadcast %cst_74 : f32 to vector<8x128xf32>
    %392 = arith.addf %391, %390 : vector<8x128xf32>
    %393 = arith.divf %391, %392 : vector<8x128xf32>
    %394 = math.tanh %388 : vector<8x128xf32>
    %395 = vector.extract_strided_slice %393 {offsets = [0, 0], sizes = [8, 32], strides = [1, 1]} : vector<8x128xf32> to vector<8x32xf32>
    %396 = vector.extract_strided_slice %393 {offsets = [0, 32], sizes = [8, 32], strides = [1, 1]} : vector<8x128xf32> to vector<8x32xf32>
    %397 = vector.extract_strided_slice %393 {offsets = [0, 96], sizes = [8, 32], strides = [1, 1]} : vector<8x128xf32> to vector<8x32xf32>
    %398 = vector.extract_strided_slice %394 {offsets = [0, 64], sizes = [8, 32], strides = [1, 1]} : vector<8x128xf32> to vector<8x32xf32>
    %399 = arith.mulf %396, %360 : vector<8x32xf32>
    %400 = arith.mulf %395, %398 : vector<8x32xf32>
    %401 = arith.addf %399, %400 : vector<8x32xf32>
    %402 = math.tanh %401 : vector<8x32xf32>
    %403 = arith.mulf %397, %402 : vector<8x32xf32>
    %404 = tpu.concatenate %403, %363 in 1 : vector<8x32xf32>, vector<8x32xf32> -> vector<8x64xf32>
    %405 = arith.truncf %404 : vector<8x64xf32> to vector<8x64xbf16>
    %cst_75 = arith.constant dense<0.000000e+00> : vector<8x128xf32>
    %406 = tpu.matmul %405, %5, %cst_75 {dimension_numbers = #tpu.dot_dimension_numbers<[1], [0], [0], [1], [0, 0, 1, 1], [], []>} : vector<8x64xbf16>, vector<64x128xbf16>, vector<8x128xf32> -> vector<8x128xf32>
    %407 = arith.addf %406, %14 : vector<8x128xf32>
    %408 = arith.negf %407 : vector<8x128xf32>
    %409 = math.exp %408 : vector<8x128xf32>
    %cst_76 = arith.constant 1.000000e+00 : f32
    %410 = vector.broadcast %cst_76 : f32 to vector<8x128xf32>
    %411 = arith.addf %410, %409 : vector<8x128xf32>
    %412 = arith.divf %410, %411 : vector<8x128xf32>
    %413 = math.tanh %407 : vector<8x128xf32>
    %414 = vector.extract_strided_slice %412 {offsets = [0, 0], sizes = [8, 32], strides = [1, 1]} : vector<8x128xf32> to vector<8x32xf32>
    %415 = vector.extract_strided_slice %413 {offsets = [0, 64], sizes = [8, 32], strides = [1, 1]} : vector<8x128xf32> to vector<8x32xf32>
    %416 = arith.mulf %414, %415 : vector<8x32xf32>
    %417 = vector.extract_strided_slice %412 {offsets = [0, 96], sizes = [8, 32], strides = [1, 1]} : vector<8x128xf32> to vector<8x32xf32>
    %418 = math.tanh %416 : vector<8x32xf32>
    %419 = arith.mulf %417, %418 : vector<8x32xf32>
    %c48 = arith.constant 48 : index
    %c0_77 = arith.constant 0 : index
    %420 = vector.load %arg5[%c48, %c0_77] : memref<64x32xf32, #tpu.memory_space<vmem>>, vector<8x32xf32>
    tpu.vector_store %arg5[%c48, %c0_77], %419 {strides = array<i32>} : memref<64x32xf32, #tpu.memory_space<vmem>>, vector<8x32xf32>,
    %421 = vector.extract_strided_slice %27 {offsets = [56, 0], sizes = [8, 32], strides = [1, 1]} : vector<64x32xf32> to vector<8x32xf32>
    %422 = tpu.concatenate %421, %384 in 1 : vector<8x32xf32>, vector<8x32xf32> -> vector<8x64xf32>
    %423 = arith.truncf %422 : vector<8x64xf32> to vector<8x64xbf16>
    %cst_78 = arith.constant dense<0.000000e+00> : vector<8x128xf32>
    %424 = tpu.matmul %423, %1, %cst_78 {dimension_numbers = #tpu.dot_dimension_numbers<[1], [0], [0], [1], [0, 0, 1, 1], [], []>} : vector<8x64xbf16>, vector<64x128xbf16>, vector<8x128xf32> -> vector<8x128xf32>
    %425 = arith.addf %424, %10 : vector<8x128xf32>
    %426 = arith.negf %425 : vector<8x128xf32>
    %427 = math.exp %426 : vector<8x128xf32>
    %cst_79 = arith.constant 1.000000e+00 : f32
    %428 = vector.broadcast %cst_79 : f32 to vector<8x128xf32>
    %429 = arith.addf %428, %427 : vector<8x128xf32>
    %430 = arith.divf %428, %429 : vector<8x128xf32>
    %431 = math.tanh %425 : vector<8x128xf32>
    %432 = vector.extract_strided_slice %430 {offsets = [0, 0], sizes = [8, 32], strides = [1, 1]} : vector<8x128xf32> to vector<8x32xf32>
    %433 = vector.extract_strided_slice %430 {offsets = [0, 32], sizes = [8, 32], strides = [1, 1]} : vector<8x128xf32> to vector<8x32xf32>
    %434 = vector.extract_strided_slice %430 {offsets = [0, 96], sizes = [8, 32], strides = [1, 1]} : vector<8x128xf32> to vector<8x32xf32>
    %435 = vector.extract_strided_slice %431 {offsets = [0, 64], sizes = [8, 32], strides = [1, 1]} : vector<8x128xf32> to vector<8x32xf32>
    %436 = arith.mulf %433, %382 : vector<8x32xf32>
    %437 = arith.mulf %432, %435 : vector<8x32xf32>
    %438 = arith.addf %436, %437 : vector<8x32xf32>
    %439 = math.tanh %438 : vector<8x32xf32>
    %440 = arith.mulf %434, %439 : vector<8x32xf32>
    %441 = tpu.concatenate %440, %403 in 1 : vector<8x32xf32>, vector<8x32xf32> -> vector<8x64xf32>
    %442 = arith.truncf %441 : vector<8x64xf32> to vector<8x64xbf16>
    %cst_80 = arith.constant dense<0.000000e+00> : vector<8x128xf32>
    %443 = tpu.matmul %442, %3, %cst_80 {dimension_numbers = #tpu.dot_dimension_numbers<[1], [0], [0], [1], [0, 0, 1, 1], [], []>} : vector<8x64xbf16>, vector<64x128xbf16>, vector<8x128xf32> -> vector<8x128xf32>
    %444 = arith.addf %443, %12 : vector<8x128xf32>
    %445 = arith.negf %444 : vector<8x128xf32>
    %446 = math.exp %445 : vector<8x128xf32>
    %cst_81 = arith.constant 1.000000e+00 : f32
    %447 = vector.broadcast %cst_81 : f32 to vector<8x128xf32>
    %448 = arith.addf %447, %446 : vector<8x128xf32>
    %449 = arith.divf %447, %448 : vector<8x128xf32>
    %450 = math.tanh %444 : vector<8x128xf32>
    %451 = vector.extract_strided_slice %449 {offsets = [0, 0], sizes = [8, 32], strides = [1, 1]} : vector<8x128xf32> to vector<8x32xf32>
    %452 = vector.extract_strided_slice %449 {offsets = [0, 32], sizes = [8, 32], strides = [1, 1]} : vector<8x128xf32> to vector<8x32xf32>
    %453 = vector.extract_strided_slice %449 {offsets = [0, 96], sizes = [8, 32], strides = [1, 1]} : vector<8x128xf32> to vector<8x32xf32>
    %454 = vector.extract_strided_slice %450 {offsets = [0, 64], sizes = [8, 32], strides = [1, 1]} : vector<8x128xf32> to vector<8x32xf32>
    %455 = arith.mulf %452, %416 : vector<8x32xf32>
    %456 = arith.mulf %451, %454 : vector<8x32xf32>
    %457 = arith.addf %455, %456 : vector<8x32xf32>
    %458 = math.tanh %457 : vector<8x32xf32>
    %459 = arith.mulf %453, %458 : vector<8x32xf32>
    %460 = tpu.concatenate %459, %419 in 1 : vector<8x32xf32>, vector<8x32xf32> -> vector<8x64xf32>
    %461 = arith.truncf %460 : vector<8x64xf32> to vector<8x64xbf16>
    %cst_82 = arith.constant dense<0.000000e+00> : vector<8x128xf32>
    %462 = tpu.matmul %461, %5, %cst_82 {dimension_numbers = #tpu.dot_dimension_numbers<[1], [0], [0], [1], [0, 0, 1, 1], [], []>} : vector<8x64xbf16>, vector<64x128xbf16>, vector<8x128xf32> -> vector<8x128xf32>
    %463 = arith.addf %462, %14 : vector<8x128xf32>
    %464 = arith.negf %463 : vector<8x128xf32>
    %465 = math.exp %464 : vector<8x128xf32>
    %cst_83 = arith.constant 1.000000e+00 : f32
    %466 = vector.broadcast %cst_83 : f32 to vector<8x128xf32>
    %467 = arith.addf %466, %465 : vector<8x128xf32>
    %468 = arith.divf %466, %467 : vector<8x128xf32>
    %469 = math.tanh %463 : vector<8x128xf32>
    %470 = vector.extract_strided_slice %468 {offsets = [0, 0], sizes = [8, 32], strides = [1, 1]} : vector<8x128xf32> to vector<8x32xf32>
    %471 = vector.extract_strided_slice %469 {offsets = [0, 64], sizes = [8, 32], strides = [1, 1]} : vector<8x128xf32> to vector<8x32xf32>
    %472 = arith.mulf %470, %471 : vector<8x32xf32>
    %473 = vector.extract_strided_slice %468 {offsets = [0, 96], sizes = [8, 32], strides = [1, 1]} : vector<8x128xf32> to vector<8x32xf32>
    %474 = math.tanh %472 : vector<8x32xf32>
    %475 = arith.mulf %473, %474 : vector<8x32xf32>
    %c56 = arith.constant 56 : index
    %c0_84 = arith.constant 0 : index
    %476 = vector.load %arg5[%c56, %c0_84] : memref<64x32xf32, #tpu.memory_space<vmem>>, vector<8x32xf32>
    tpu.vector_store %arg5[%c56, %c0_84], %475 {strides = array<i32>} : memref<64x32xf32, #tpu.memory_space<vmem>>, vector<8x32xf32>,
    %c0_85 = arith.constant 0 : index
    %c0_86 = arith.constant 0 : index
    %477 = vector.load %arg5[%c0_85, %c0_86] : memref<64x32xf32, #tpu.memory_space<vmem>>, vector<64x32xf32>
    %478 = arith.truncf %477 : vector<64x32xf32> to vector<64x32xbf16>
    %cst_87 = arith.constant dense<0.000000e+00> : vector<64x128xf32>
    %479 = tpu.matmul %478, %8, %cst_87 {dimension_numbers = #tpu.dot_dimension_numbers<[1], [0], [0], [1], [0, 0, 1, 1], [], []>} : vector<64x32xbf16>, vector<32x128xbf16>, vector<64x128xf32> -> vector<64x128xf32>
    %480 = vector.broadcast %20 : vector<1x128xf32> to vector<64x128xf32>
    %481 = arith.addf %479, %480 : vector<64x128xf32>
    %c0_88 = arith.constant 0 : index
    %c0_89 = arith.constant 0 : index
    %482 = vector.load %arg4[%c0_88, %c0_89] : memref<64x128xf32, #tpu.memory_space<vmem>>, vector<64x128xf32>
    tpu.vector_store %arg4[%c0_88, %c0_89], %481 {strides = array<i32>} : memref<64x128xf32, #tpu.memory_space<vmem>>, vector<64x128xf32>,
    return
  }
  func.func @transform_0(%arg0: i32) -> (i32, i32) {
    %c0_i32 = arith.constant 0 : i32
    %c0_i32_0 = arith.constant 0 : i32
    return %arg0, %c0_i32 : i32, i32
  }
  func.func @transform_1(%arg0: i32) -> (i32, i32, i32) {
    %c0_i32 = arith.constant 0 : i32
    %c0_i32_0 = arith.constant 0 : i32
    %c0_i32_1 = arith.constant 0 : i32
    %c0_i32_2 = arith.constant 0 : i32
    return %c0_i32, %c0_i32_0, %c0_i32_1 : i32, i32, i32
  }
  func.func @transform_2(%arg0: i32) -> (i32, i32, i32) {
    %c0_i32 = arith.constant 0 : i32
    %c0_i32_0 = arith.constant 0 : i32
    %c0_i32_1 = arith.constant 0 : i32
    %c0_i32_2 = arith.constant 0 : i32
    return %c0_i32, %c0_i32_0, %c0_i32_1 : i32, i32, i32
  }
  func.func @transform_3(%arg0: i32) -> (i32, i32) {
    %c0_i32 = arith.constant 0 : i32
    %c0_i32_0 = arith.constant 0 : i32
    return %arg0, %c0_i32 : i32, i32
  }
}

</mosaic_0001>

<llo_original>
// kernel: tpu_custom_call.1
$region0: #{tpu_custom_call.1}
  #allocation0 [shape = 'u32[]', space=smem, size = 0x4, offset = 0x4, fixed_abs, tag = 'smem constant byte address 0x4 - core index']
  #allocation1 [shape = 'u32[144,128]{1,0:T(1,128)}', space=vmem, size = 0x12000, scoped, tag = 'internal scratch']
  #allocation2 [shape = 'f32[64,32]{1,0:T(8,128)}', space=vmem, size = 0x8000, scoped, tag = 'scratch operand']
  %s0 = inlined_call_operand.hbm [shape: bf16[64,64], index: 0, kind: input, shape index: {}]
  %s1 = inlined_call_operand.hbm [shape: bf16[5,64,128], index: 1, kind: input, shape index: {}]
  %s2 = inlined_call_operand.hbm [shape: f32[5,8,128], index: 2, kind: input, shape index: {}]
  %s3 = inlined_call_operand.hbm [shape: f32[64,128], index: 3, kind: output, shape index: {}]
  %s4 = sld [smem:[#allocation0]]
  $region34: #{tpu_custom_call.1} parent=0
    _
  %s6 = ssub.s32 1, %s4
  %s7 = scalar_select 0, %s6, %s4
  $region1: #{tpu_custom_call.1} parent=0
    #allocation3 [shape = 'u8[16384]{0}', space=vmem, size = 0x4000, scoped, tag = 'input window, operand 0, single buffered']
    #allocation4 [shape = 's32[1]{0}', space=sflag, size = 0x4, scoped, tag = 'scoped memory for tpu_custom_call.1']
    #allocation5 [shape = 's32[1]{0}', space=sflag, size = 0x4, scoped, tag = 'scoped memory for tpu_custom_call.1']
    #allocation6 [shape = 'u8[81920]{0}', space=vmem, size = 0x14000, scoped, tag = 'input window, operand 1, single buffered']
    #allocation7 [shape = 's32[1]{0}', space=sflag, size = 0x4, scoped, tag = 'scoped memory for tpu_custom_call.1']
    #allocation8 [shape = 'u8[20480]{0}', space=vmem, size = 0x5000, scoped, tag = 'input window, operand 2, single buffered']
    #allocation9 [shape = 'u8[32768]{0}', space=vmem, size = 0x8000, scoped, tag = 'output window, operand 0, single buffered']
    %8 = vsyncpa [#allocation4], 0
    %9 = vsyncpa [#allocation7], 0
    %10 = vsyncpa [#allocation5], 0
    // Predicated region
    $region2: #{tpu_custom_call.1} parent=1 // pred_check
      _
    $region3: #{tpu_custom_call.1} parent=1 // pred_check_branch
      %12 = sbr.rel (0) target = $region5
    $region4: #{tpu_custom_call.1} parent=1 // pred_region
      %s14 = ssub.s32 512, 512
      %15 = vsyncadd [#allocation4], %s14
      %s16 = sshll.u32 [#allocation3], 4
      %s17 = int_to_ptr.vmem [resolvable:$true] %s16
      %22 = dma.hbm_to_vmem [thread:$0]  %s0, 512, %s17, [#allocation4], 64, 64, 4
    $region5: #{tpu_custom_call.1} parent=1 // pred_fallthru
      _
    // Predicated region
    $region6: #{tpu_custom_call.1} parent=1 // pred_check
      _
    $region7: #{tpu_custom_call.1} parent=1 // pred_check_branch
      %24 = sbr.rel (0) target = $region9
    $region8: #{tpu_custom_call.1} parent=1 // pred_region
      %s26 = ssub.s32 2560, 2560
      %27 = vsyncadd [#allocation7], %s26
      %s28 = sshll.u32 [#allocation6], 4
      %s29 = int_to_ptr.vmem [resolvable:$true] %s28
      %34 = dma.hbm_to_vmem [thread:$0]  %s1, 2560, %s29, [#allocation7], 64, 64, 4
    $region9: #{tpu_custom_call.1} parent=1 // pred_fallthru
      _
    // Predicated region
    $region10: #{tpu_custom_call.1} parent=1 // pred_check
      _
    $region11: #{tpu_custom_call.1} parent=1 // pred_check_branch
      %36 = sbr.rel (0) target = $region13
    $region12: #{tpu_custom_call.1} parent=1 // pred_region
      %s38 = ssub.s32 640, 640
      %39 = vsyncadd [#allocation7], %s38
      %s40 = sshll.u32 [#allocation8], 4
      %s41 = int_to_ptr.vmem [resolvable:$true] %s40
      %46 = dma.hbm_to_vmem [thread:$0]  %s2, 640, %s41, [#allocation7], 128, 128, 8
    $region13: #{tpu_custom_call.1} parent=1 // pred_fallthru
      _
    // Predicated region
    $region14: #{tpu_custom_call.1} parent=1 // pred_check
      _
    $region15: #{tpu_custom_call.1} parent=1 // pred_check_branch
      %48 = sbr.rel (0) target = $region17
    $region16: #{tpu_custom_call.1} parent=1 // pred_region
      %49 = dma.done [#allocation4], 512
    $region17: #{tpu_custom_call.1} parent=1 // pred_fallthru
      _
    // Predicated region
    $region18: #{tpu_custom_call.1} parent=1 // pred_check
      _
    $region19: #{tpu_custom_call.1} parent=1 // pred_check_branch
      %51 = sbr.rel (0) target = $region21
    $region20: #{tpu_custom_call.1} parent=1 // pred_region
      %52 = dma.done [#allocation7], 2560
    $region21: #{tpu_custom_call.1} parent=1 // pred_fallthru
      _
    // Predicated region
    $region22: #{tpu_custom_call.1} parent=1 // pred_check
      _
    $region23: #{tpu_custom_call.1} parent=1 // pred_check_branch
      %54 = sbr.rel (0) target = $region25
    $region24: #{tpu_custom_call.1} parent=1 // pred_region
      %55 = dma.done [#allocation7], 640
    $region25: #{tpu_custom_call.1} parent=1 // pred_fallthru
      _
    %v57 = vld [vmem:[#allocation6] sm:$0xf]
    %v58 = vld [vmem:[#allocation6 + $0x4] sm:$0xf]
    %v59 = vld [vmem:[#allocation6 + $0x8] sm:$0xf]
    %v60 = vld [vmem:[#allocation6 + $0xc] sm:$0xf]
    %v61 = vld [vmem:[#allocation6 + $0x10] sm:$0xf]
    %v62 = vld [vmem:[#allocation6 + $0x14] sm:$0xf]
    %v63 = vld [vmem:[#allocation6 + $0x18] sm:$0xf]
    %v64 = vld [vmem:[#allocation6 + $0x1c] sm:$0xf]
    %s65 = scalar_lea.vmem [#allocation6], 32
    %v66 = vld [vmem:[%s65] sm:$0xf]
    %v67 = vld [vmem:[%s65 + $0x4] sm:$0xf]
    %v68 = vld [vmem:[%s65 + $0x8] sm:$0xf]
    %v69 = vld [vmem:[%s65 + $0xc] sm:$0xf]
    %v70 = vld [vmem:[%s65 + $0x10] sm:$0xf]
    %v71 = vld [vmem:[%s65 + $0x14] sm:$0xf]
    %v72 = vld [vmem:[%s65 + $0x18] sm:$0xf]
    %v73 = vld [vmem:[%s65 + $0x1c] sm:$0xf]
    %s74 = scalar_lea.vmem [#allocation6], 64
    %v75 = vld [vmem:[%s74] sm:$0xf]
    %v76 = vld [vmem:[%s74 + $0x4] sm:$0xf]
    %v77 = vld [vmem:[%s74 + $0x8] sm:$0xf]
    %v78 = vld [vmem:[%s74 + $0xc] sm:$0xf]
    %v79 = vld [vmem:[%s74 + $0x10] sm:$0xf]
    %v80 = vld [vmem:[%s74 + $0x14] sm:$0xf]
    %v81 = vld [vmem:[%s74 + $0x18] sm:$0xf]
    %v82 = vld [vmem:[%s74 + $0x1c] sm:$0xf]
    %s83 = scalar_lea.vmem [#allocation6], 128
    %v84 = vld [vmem:[%s83] sm:$0xf]
    %v85 = vld [vmem:[%s83 + $0x4] sm:$0xf]
    %v86 = vld [vmem:[%s83 + $0x8] sm:$0xf]
    %v87 = vld [vmem:[%s83 + $0xc] sm:$0xf]
    %v88 = vld [vmem:[#allocation8] sm:$0xff]
    %s89 = scalar_lea.vmem [#allocation8], 8
    %v90 = vld [vmem:[%s89] sm:$0xff]
    %s91 = scalar_lea.vmem [#allocation8], 16
    %v92 = vld [vmem:[%s91] sm:$0xff]
    %s93 = scalar_lea.vmem [#allocation8], 24
    %v94 = vld [vmem:[%s93] sm:$0xff]
    %s95 = scalar_lea.vmem [#allocation8], 32
    %v96 = vld [vmem:[%s95] sm:$0xff]
    %v97 = vld [vmem:[#allocation3] sm:$0xf]
    %v98 = vld [vmem:[#allocation3 + $0x4] sm:$0xf]
    %v99 = vld [vmem:[#allocation3 + $0x8] sm:$0xf]
    %v100 = vld [vmem:[#allocation3 + $0xc] sm:$0xf]
    %v101 = vld [vmem:[#allocation3 + $0x10] sm:$0xf]
    %v102 = vld [vmem:[#allocation3 + $0x14] sm:$0xf]
    %v103 = vld [vmem:[#allocation3 + $0x18] sm:$0xf]
    %v104 = vld [vmem:[#allocation3 + $0x1c] sm:$0xf]
    %s105 = scalar_lea.vmem [#allocation6], 96
    %v106 = vld [vmem:[%s105] sm:$0xf]
    %v107 = vld [vmem:[%s105 + $0x4] sm:$0xf]
    %v108 = vld [vmem:[%s105 + $0x8] sm:$0xf]
    %v109 = vld [vmem:[%s105 + $0xc] sm:$0xf]
    %v110 = vld [vmem:[%s105 + $0x10] sm:$0xf]
    %v111 = vld [vmem:[%s105 + $0x14] sm:$0xf]
    %v112 = vld [vmem:[%s105 + $0x18] sm:$0xf]
    %v113 = vld [vmem:[%s105 + $0x1c] sm:$0xf]
    %v122 = vunpack.c.l.b16 %v97
    %v123 = vunpack.c.l.b16 %v98
    %v124 = vunpack.c.l.b16 %v99
    %v125 = vunpack.c.l.b16 %v100
    %v126 = vunpack.c.l.b16 %v101
    %v127 = vunpack.c.l.b16 %v102
    %v128 = vunpack.c.l.b16 %v103
    %v129 = vunpack.c.l.b16 %v104
    %v130 = vpack.c.b16 %v123, %v122
    %v131 = vpack.c.b16 %v125, %v124
    %v132 = vpack.c.b16 %v127, %v126
    %v133 = vpack.c.b16 %v129, %v128
    %v142 = vunpack.c.l.b16 %v106
    %v143 = vunpack.c.l.b16 %v107
    %v144 = vunpack.c.l.b16 %v108
    %v145 = vunpack.c.l.b16 %v109
    %v146 = vunpack.c.l.b16 %v110
    %v147 = vunpack.c.l.b16 %v111
    %v148 = vunpack.c.l.b16 %v112
    %v149 = vunpack.c.l.b16 %v113
    %v150 = vpack.c.b16 %v143, %v142
    %v151 = vpack.c.b16 %v145, %v144
    %v152 = vpack.c.b16 %v147, %v146
    %v153 = vpack.c.b16 %v149, %v148
    %vm158 = vcmask 523264
    %v160 = vsel %vm158, %v130, 0
    %v163 = vsel %vm158, %v131, 0
    %v166 = vsel %vm158, %v132, 0
    %v169 = vsel %vm158, %v133, 0
    %171 = vmatprep.subr.bf16.mxu0 0
    %172 = vmatpush1.bf16.msra.mxu0 %v150
    %173 = vmatprep.subr.bf16.mxu0 0
    %174 = vmatpush1.bf16.msra.mxu0 %v151
    %175 = vmatprep.subr.bf16.mxu0 0
    %176 = vmatpush1.bf16.msra.mxu0 %v152
    %177 = vmatprep.subr.bf16.mxu0 0
    %178 = vmatpush1.bf16.msra.mxu0 %v153
    %179 = vmatprep.subr.bf16.mxu0 0
    %180 = vmatpush1.bf16.msra.mxu0 0
    %181 = vmatprep.subr.bf16.mxu0 0
    %182 = vmatpush1.bf16.msra.mxu0 0
    %183 = vmatprep.subr.bf16.mxu0 0
    %184 = vmatpush1.bf16.msra.mxu0 0
    %185 = vmatprep.subr.bf16.mxu0 0
    %186 = vmatpush1.bf16.msra.mxu0 0
    %187 = vmatprep.subr.bf16.mxu0 0
    %188 = vmatpush1.bf16.msra.mxu0 0
    %189 = vmatprep.subr.bf16.mxu0 0
    %190 = vmatpush1.bf16.msra.mxu0 0
    %191 = vmatprep.subr.bf16.mxu0 0
    %192 = vmatpush1.bf16.msra.mxu0 0
    %193 = vmatprep.subr.bf16.mxu0 0
    %194 = vmatpush1.bf16.msra.mxu0 0
    %195 = vmatprep.subr.bf16.mxu0 0
    %196 = vmatpush1.bf16.msra.mxu0 0
    %197 = vmatprep.subr.bf16.mxu0 0
    %198 = vmatpush1.bf16.msra.mxu0 0
    %199 = vmatprep.subr.bf16.mxu0 0
    %200 = vmatpush1.bf16.msra.mxu0 0
    %201 = vmatprep.subr.bf16.mxu0 0
    %202 = vmatpush1.bf16.msra.mxu0 0
    %203 = vmatprep.mubr.bf16.mxu0 0
    %204 = vmatmul.mubr.bf16.gmra.mrb[0].mxu0 %v160
    %v205 = vpop.f32.mrb[0].mxu0
    %v206 = vadd.f32 0.0, %v205
    %v207 = vpop.f32.mrb[0].mxu0
    %v208 = vpop.f32.mrb[0].mxu0
    %v209 = vadd.f32 0.0, %v208
    %v210 = vpop.f32.mrb[0].mxu0
    %211 = vmatprep.mubr.bf16.mxu0 0
    %212 = vmatmul.mubr.bf16.gmra.mrb[0].mxu0 %v163
    %v213 = vpop.f32.mrb[0].mxu0
    %v214 = vadd.f32 0.0, %v213
    %v215 = vpop.f32.mrb[0].mxu0
    %v216 = vpop.f32.mrb[0].mxu0
    %v217 = vadd.f32 0.0, %v216
    %v218 = vpop.f32.mrb[0].mxu0
    %219 = vmatprep.mubr.bf16.mxu0 0
    %220 = vmatmul.mubr.bf16.gmra.mrb[0].mxu0 %v166
    %v221 = vpop.f32.mrb[0].mxu0
    %v222 = vadd.f32 0.0, %v221
    %v223 = vpop.f32.mrb[0].mxu0
    %v224 = vpop.f32.mrb[0].mxu0
    %v225 = vadd.f32 0.0, %v224
    %v226 = vpop.f32.mrb[0].mxu0
    %227 = vmatprep.mubr.bf16.mxu0 0
    %228 = vmatmul.mubr.bf16.gmra.mrb[0].mxu0 %v169
    %v229 = vpop.f32.mrb[0].mxu0
    %v230 = vadd.f32 0.0, %v229
    %v231 = vpop.f32.mrb[0].mxu0
    %v232 = vpop.f32.mrb[0].mxu0
    %v233 = vadd.f32 0.0, %v232
    %v234 = vpop.f32.mrb[0].mxu0
    %235 = vdwg.mxu0
    %v236 = vlaneseq
    %v237 = vshrl.u32 %v236, 7
    %v238 = vsub.s32 0, %v237
    %v239 = vrot.slane %v94, %v238
    %v240 = vadd.f32 %v206, %v239
    %v241 = vadd.f32 %v209, %v239
    %v242 = vadd.f32 %v214, %v239
    %v243 = vadd.f32 %v217, %v239
    %v244 = vadd.f32 %v222, %v239
    %v245 = vadd.f32 %v225, %v239
    %v246 = vadd.f32 %v230, %v239
    %v247 = vadd.f32 %v233, %v239
    %vm248 = vcmask 261120
    %v249 = vsel %vm248, %v240, 0.0
    %v250 = vpack.c.bf16 %v249, %v249
    %v259 = vunpack.c.l.b16 %v57
    %v260 = vunpack.c.l.b16 %v58
    %v261 = vunpack.c.l.b16 %v59
    %v262 = vunpack.c.l.b16 %v60
    %v263 = vunpack.c.l.b16 %v61
    %v264 = vunpack.c.l.b16 %v62
    %v265 = vunpack.c.l.b16 %v63
    %v266 = vunpack.c.l.b16 %v64
    %v267 = vpack.c.b16 %v260, %v259
    %v268 = vpack.c.b16 %v262, %v261
    %v269 = vpack.c.b16 %v264, %v263
    %v270 = vpack.c.b16 %v266, %v265
    %v276 = vsel %vm158, %v250, 0
    %278 = vmatprep.subr.bf16.mxu0 0
    %279 = vmatpush1.bf16.msra.mxu0 %v267
    %280 = vmatprep.subr.bf16.mxu0 0
    %281 = vmatpush1.bf16.msra.mxu0 %v268
    %282 = vmatprep.subr.bf16.mxu0 0
    %283 = vmatpush1.bf16.msra.mxu0 %v269
    %284 = vmatprep.subr.bf16.mxu0 0
    %285 = vmatpush1.bf16.msra.mxu0 %v270
    %286 = vmatprep.subr.bf16.mxu0 0
    %287 = vmatpush1.bf16.msra.mxu0 0
    %288 = vmatprep.subr.bf16.mxu0 0
    %289 = vmatpush1.bf16.msra.mxu0 0
    %290 = vmatprep.subr.bf16.mxu0 0
    %291 = vmatpush1.bf16.msra.mxu0 0
    %292 = vmatprep.subr.bf16.mxu0 0
    %293 = vmatpush1.bf16.msra.mxu0 0
    %294 = vmatprep.subr.bf16.mxu0 0
    %295 = vmatpush1.bf16.msra.mxu0 0
    %296 = vmatprep.subr.bf16.mxu0 0
    %297 = vmatpush1.bf16.msra.mxu0 0
    %298 = vmatprep.subr.bf16.mxu0 0
    %299 = vmatpush1.bf16.msra.mxu0 0
    %300 = vmatprep.subr.bf16.mxu0 0
    %301 = vmatpush1.bf16.msra.mxu0 0
    %302 = vmatprep.subr.bf16.mxu0 0
    %303 = vmatpush1.bf16.msra.mxu0 0
    %304 = vmatprep.subr.bf16.mxu0 0
    %305 = vmatpush1.bf16.msra.mxu0 0
    %306 = vmatprep.subr.bf16.mxu0 0
    %307 = vmatpush1.bf16.msra.mxu0 0
    %308 = vmatprep.subr.bf16.mxu0 0
    %309 = vmatpush1.bf16.msra.mxu0 0
    %310 = vmatprep.mubr.bf16.mxu0 0
    %311 = vmatmul.mubr.bf16.gmra.mrb[0].mxu0 %v276
    %v312 = vpop.f32.mrb[0].mxu0
    %v313 = vadd.f32 %v88, %v312
    %v314 = vpop.f32.mrb[0].mxu0
    %v315 = vpop.f32.mrb[0].mxu0
    %v316 = vpop.f32.mrb[0].mxu0
    %317 = vdwg.mxu0
    %v318 = vxor.u32 %v313, 2147483648
    %v319 = vmul.f32 %v318, 1.442695
    %v320 = vpow.pop %v319
    %v321 = vadd.f32 %v320, 1.0
    %v322 = vrcp.pop %v321
    %v323 = vmul.f32 1.0, %v322
    %v324 = vtanh.pop %v313
    %v325 = vmul.f32 %v323, 0.0
    %327 = vrot.lane.b32.xlu0 %v324, 64
    %v328 = vpop.permute.xlu0 %327
    %v330 = vmul.f32 %v323, %v328
    %332 = vrot.lane.b32.xlu0 %v330, 32
    %v333 = vpop.permute.xlu0 %332
    %v335 = vadd.f32 %v325, %v333
    %v336 = vtanh.pop %v335
    %338 = vrot.lane.b32.xlu0 %v336, 64
    %v339 = vpop.permute.xlu0 %338
    %v341 = vmul.f32 %v323, %v339
    %343 = vrot.lane.b32.xlu0 %v341, 32
    %v344 = vpop.permute.xlu0 %343
    %v346 = vsel %vm248, %v344, 0.0
    %v347 = vpack.c.bf16 %v346, %v346
    %v356 = vunpack.c.l.b16 %v66
    %v357 = vunpack.c.l.b16 %v67
    %v358 = vunpack.c.l.b16 %v68
    %v359 = vunpack.c.l.b16 %v69
    %v360 = vunpack.c.l.b16 %v70
    %v361 = vunpack.c.l.b16 %v71
    %v362 = vunpack.c.l.b16 %v72
    %v363 = vunpack.c.l.b16 %v73
    %v364 = vpack.c.b16 %v357, %v356
    %v365 = vpack.c.b16 %v359, %v358
    %v366 = vpack.c.b16 %v361, %v360
    %v367 = vpack.c.b16 %v363, %v362
    %v373 = vsel %vm158, %v347, 0
    %375 = vmatprep.subr.bf16.mxu0 0
    %376 = vmatpush1.bf16.msra.mxu0 %v364
    %377 = vmatprep.subr.bf16.mxu0 0
    %378 = vmatpush1.bf16.msra.mxu0 %v365
    %379 = vmatprep.subr.bf16.mxu0 0
    %380 = vmatpush1.bf16.msra.mxu0 %v366
    %381 = vmatprep.subr.bf16.mxu0 0
    %382 = vmatpush1.bf16.msra.mxu0 %v367
    %383 = vmatprep.subr.bf16.mxu0 0
    %384 = vmatpush1.bf16.msra.mxu0 0
    %385 = vmatprep.subr.bf16.mxu0 0
    %386 = vmatpush1.bf16.msra.mxu0 0
    %387 = vmatprep.subr.bf16.mxu0 0
    %388 = vmatpush1.bf16.msra.mxu0 0
    %389 = vmatprep.subr.bf16.mxu0 0
    %390 = vmatpush1.bf16.msra.mxu0 0
    %391 = vmatprep.subr.bf16.mxu0 0
    %392 = vmatpush1.bf16.msra.mxu0 0
    %393 = vmatprep.subr.bf16.mxu0 0
    %394 = vmatpush1.bf16.msra.mxu0 0
    %395 = vmatprep.subr.bf16.mxu0 0
    %396 = vmatpush1.bf16.msra.mxu0 0
    %397 = vmatprep.subr.bf16.mxu0 0
    %398 = vmatpush1.bf16.msra.mxu0 0
    %399 = vmatprep.subr.bf16.mxu0 0
    %400 = vmatpush1.bf16.msra.mxu0 0
    %401 = vmatprep.subr.bf16.mxu0 0
    %402 = vmatpush1.bf16.msra.mxu0 0
    %403 = vmatprep.subr.bf16.mxu0 0
    %404 = vmatpush1.bf16.msra.mxu0 0
    %405 = vmatprep.subr.bf16.mxu0 0
    %406 = vmatpush1.bf16.msra.mxu0 0
    %407 = vmatprep.mubr.bf16.mxu0 0
    %408 = vmatmul.mubr.bf16.gmra.mrb[0].mxu0 %v373
    %v409 = vpop.f32.mrb[0].mxu0
    %v410 = vadd.f32 %v90, %v409
    %v411 = vpop.f32.mrb[0].mxu0
    %v412 = vpop.f32.mrb[0].mxu0
    %v413 = vpop.f32.mrb[0].mxu0
    %414 = vdwg.mxu0
    %v415 = vxor.u32 %v410, 2147483648
    %v416 = vmul.f32 %v415, 1.442695
    %v417 = vpow.pop %v416
    %v418 = vadd.f32 %v417, 1.0
    %v419 = vrcp.pop %v418
    %v420 = vmul.f32 1.0, %v419
    %v421 = vtanh.pop %v410
    %v422 = vmul.f32 %v420, 0.0
    %424 = vrot.lane.b32.xlu0 %v421, 64
    %v425 = vpop.permute.xlu0 %424
    %v427 = vmul.f32 %v420, %v425
    %429 = vrot.lane.b32.xlu0 %v427, 32
    %v430 = vpop.permute.xlu0 %429
    %v432 = vadd.f32 %v422, %v430
    %v433 = vtanh.pop %v432
    %435 = vrot.lane.b32.xlu0 %v433, 64
    %v436 = vpop.permute.xlu0 %435
    %v438 = vmul.f32 %v420, %v436
    %440 = vrot.lane.b32.xlu0 %v438, 32
    %v441 = vpop.permute.xlu0 %440
    %v443 = vsel %vm248, %v441, 0.0
    %v444 = vpack.c.bf16 %v443, %v443
    %v453 = vunpack.c.l.b16 %v75
    %v454 = vunpack.c.l.b16 %v76
    %v455 = vunpack.c.l.b16 %v77
    %v456 = vunpack.c.l.b16 %v78
    %v457 = vunpack.c.l.b16 %v79
    %v458 = vunpack.c.l.b16 %v80
    %v459 = vunpack.c.l.b16 %v81
    %v460 = vunpack.c.l.b16 %v82
    %v461 = vpack.c.b16 %v454, %v453
    %v462 = vpack.c.b16 %v456, %v455
    %v463 = vpack.c.b16 %v458, %v457
    %v464 = vpack.c.b16 %v460, %v459
    %v470 = vsel %vm158, %v444, 0
    %472 = vmatprep.subr.bf16.mxu0 0
    %473 = vmatpush1.bf16.msra.mxu0 %v461
    %474 = vmatprep.subr.bf16.mxu0 0
    %475 = vmatpush1.bf16.msra.mxu0 %v462
    %476 = vmatprep.subr.bf16.mxu0 0
    %477 = vmatpush1.bf16.msra.mxu0 %v463
    %478 = vmatprep.subr.bf16.mxu0 0
    %479 = vmatpush1.bf16.msra.mxu0 %v464
    %480 = vmatprep.subr.bf16.mxu0 0
    %481 = vmatpush1.bf16.msra.mxu0 0
    %482 = vmatprep.subr.bf16.mxu0 0
    %483 = vmatpush1.bf16.msra.mxu0 0
    %484 = vmatprep.subr.bf16.mxu0 0
    %485 = vmatpush1.bf16.msra.mxu0 0
    %486 = vmatprep.subr.bf16.mxu0 0
    %487 = vmatpush1.bf16.msra.mxu0 0
    %488 = vmatprep.subr.bf16.mxu0 0
    %489 = vmatpush1.bf16.msra.mxu0 0
    %490 = vmatprep.subr.bf16.mxu0 0
    %491 = vmatpush1.bf16.msra.mxu0 0
    %492 = vmatprep.subr.bf16.mxu0 0
    %493 = vmatpush1.bf16.msra.mxu0 0
    %494 = vmatprep.subr.bf16.mxu0 0
    %495 = vmatpush1.bf16.msra.mxu0 0
    %496 = vmatprep.subr.bf16.mxu0 0
    %497 = vmatpush1.bf16.msra.mxu0 0
    %498 = vmatprep.subr.bf16.mxu0 0
    %499 = vmatpush1.bf16.msra.mxu0 0
    %500 = vmatprep.subr.bf16.mxu0 0
    %501 = vmatpush1.bf16.msra.mxu0 0
    %502 = vmatprep.subr.bf16.mxu0 0
    %503 = vmatpush1.bf16.msra.mxu0 0
    %504 = vmatprep.mubr.bf16.mxu0 0
    %505 = vmatmul.mubr.bf16.gmra.mrb[0].mxu0 %v470
    %v506 = vpop.f32.mrb[0].mxu0
    %v507 = vadd.f32 %v92, %v506
    %v508 = vpop.f32.mrb[0].mxu0
    %v509 = vpop.f32.mrb[0].mxu0
    %v510 = vpop.f32.mrb[0].mxu0
    %511 = vdwg.mxu0
    %v512 = vxor.u32 %v507, 2147483648
    %v513 = vmul.f32 %v512, 1.442695
    %v514 = vpow.pop %v513
    %v515 = vadd.f32 %v514, 1.0
    %v516 = vrcp.pop %v515
    %v517 = vmul.f32 1.0, %v516
    %v518 = vtanh.pop %v507
    %520 = vrot.lane.b32.xlu0 %v518, 64
    %v521 = vpop.permute.xlu0 %520
    %v523 = vmul.f32 %v517, %v521
    %v524 = vtanh.pop %v523
    %526 = vrot.lane.b32.xlu0 %v524, 96
    %v527 = vpop.permute.xlu0 %526
    %v529 = vmul.f32 %v517, %v527
    %531 = vrot.lane.b32.xlu0 %v529, 32
    %v532 = vpop.permute.xlu0 %531
    %534 = vst.msk [vmem:[#allocation2] sm:$0xff] %vm248, %v532
    %535 = vrot.lane.b32.xlu0 %v341, 64
    %v536 = vpop.permute.xlu0 %535
    %v538 = vsel %vm248, %v241, %v536
    %v539 = vpack.c.bf16 %v538, %v538
    %v541 = vsel %vm158, %v539, 0
    %543 = vmatprep.subr.bf16.mxu0 0
    %544 = vmatpush1.bf16.msra.mxu0 %v267
    %545 = vmatprep.subr.bf16.mxu0 0
    %546 = vmatpush1.bf16.msra.mxu0 %v268
    %547 = vmatprep.subr.bf16.mxu0 0
    %548 = vmatpush1.bf16.msra.mxu0 %v269
    %549 = vmatprep.subr.bf16.mxu0 0
    %550 = vmatpush1.bf16.msra.mxu0 %v270
    %551 = vmatprep.subr.bf16.mxu0 0
    %552 = vmatpush1.bf16.msra.mxu0 0
    %553 = vmatprep.subr.bf16.mxu0 0
    %554 = vmatpush1.bf16.msra.mxu0 0
    %555 = vmatprep.subr.bf16.mxu0 0
    %556 = vmatpush1.bf16.msra.mxu0 0
    %557 = vmatprep.subr.bf16.mxu0 0
    %558 = vmatpush1.bf16.msra.mxu0 0
    %559 = vmatprep.subr.bf16.mxu0 0
    %560 = vmatpush1.bf16.msra.mxu0 0
    %561 = vmatprep.subr.bf16.mxu0 0
    %562 = vmatpush1.bf16.msra.mxu0 0
    %563 = vmatprep.subr.bf16.mxu0 0
    %564 = vmatpush1.bf16.msra.mxu0 0
    %565 = vmatprep.subr.bf16.mxu0 0
    %566 = vmatpush1.bf16.msra.mxu0 0
    %567 = vmatprep.subr.bf16.mxu0 0
    %568 = vmatpush1.bf16.msra.mxu0 0
    %569 = vmatprep.subr.bf16.mxu0 0
    %570 = vmatpush1.bf16.msra.mxu0 0
    %571 = vmatprep.subr.bf16.mxu0 0
    %572 = vmatpush1.bf16.msra.mxu0 0
    %573 = vmatprep.subr.bf16.mxu0 0
    %574 = vmatpush1.bf16.msra.mxu0 0
    %575 = vmatprep.mubr.bf16.mxu0 0
    %576 = vmatmul.mubr.bf16.gmra.mrb[0].mxu0 %v541
    %v577 = vpop.f32.mrb[0].mxu0
    %v578 = vadd.f32 %v88, %v577
    %v579 = vpop.f32.mrb[0].mxu0
    %v580 = vpop.f32.mrb[0].mxu0
    %v581 = vpop.f32.mrb[0].mxu0
    %582 = vdwg.mxu0
    %v583 = vxor.u32 %v578, 2147483648
    %v584 = vmul.f32 %v583, 1.442695
    %v585 = vpow.pop %v584
    %v586 = vadd.f32 %v585, 1.0
    %v587 = vrcp.pop %v586
    %v588 = vmul.f32 1.0, %v587
    %v589 = vtanh.pop %v578
    %v590 = vmul.f32 %v588, %v335
    %592 = vrot.lane.b32.xlu0 %v589, 64
    %v593 = vpop.permute.xlu0 %592
    %v595 = vmul.f32 %v588, %v593
    %597 = vrot.lane.b32.xlu0 %v595, 32
    %v598 = vpop.permute.xlu0 %597
    %v600 = vadd.f32 %v590, %v598
    %v601 = vtanh.pop %v600
    %603 = vrot.lane.b32.xlu0 %v601, 64
    %v604 = vpop.permute.xlu0 %603
    %v606 = vmul.f32 %v588, %v604
    %608 = vrot.lane.b32.xlu0 %v606, 32
    %v609 = vpop.permute.xlu0 %608
    %611 = vrot.lane.b32.xlu0 %v438, 64
    %v612 = vpop.permute.xlu0 %611
    %v614 = vsel %vm248, %v609, %v612
    %v615 = vpack.c.bf16 %v614, %v614
    %v617 = vsel %vm158, %v615, 0
    %619 = vmatprep.subr.bf16.mxu0 0
    %620 = vmatpush1.bf16.msra.mxu0 %v364
    %621 = vmatprep.subr.bf16.mxu0 0
    %622 = vmatpush1.bf16.msra.mxu0 %v365
    %623 = vmatprep.subr.bf16.mxu0 0
    %624 = vmatpush1.bf16.msra.mxu0 %v366
    %625 = vmatprep.subr.bf16.mxu0 0
    %626 = vmatpush1.bf16.msra.mxu0 %v367
    %627 = vmatprep.subr.bf16.mxu0 0
    %628 = vmatpush1.bf16.msra.mxu0 0
    %629 = vmatprep.subr.bf16.mxu0 0
    %630 = vmatpush1.bf16.msra.mxu0 0
    %631 = vmatprep.subr.bf16.mxu0 0
    %632 = vmatpush1.bf16.msra.mxu0 0
    %633 = vmatprep.subr.bf16.mxu0 0
    %634 = vmatpush1.bf16.msra.mxu0 0
    %635 = vmatprep.subr.bf16.mxu0 0
    %636 = vmatpush1.bf16.msra.mxu0 0
    %637 = vmatprep.subr.bf16.mxu0 0
    %638 = vmatpush1.bf16.msra.mxu0 0
    %639 = vmatprep.subr.bf16.mxu0 0
    %640 = vmatpush1.bf16.msra.mxu0 0
    %641 = vmatprep.subr.bf16.mxu0 0
    %642 = vmatpush1.bf16.msra.mxu0 0
    %643 = vmatprep.subr.bf16.mxu0 0
    %644 = vmatpush1.bf16.msra.mxu0 0
    %645 = vmatprep.subr.bf16.mxu0 0
    %646 = vmatpush1.bf16.msra.mxu0 0
    %647 = vmatprep.subr.bf16.mxu0 0
    %648 = vmatpush1.bf16.msra.mxu0 0
    %649 = vmatprep.subr.bf16.mxu0 0
    %650 = vmatpush1.bf16.msra.mxu0 0
    %651 = vmatprep.mubr.bf16.mxu0 0
    %652 = vmatmul.mubr.bf16.gmra.mrb[0].mxu0 %v617
    %v653 = vpop.f32.mrb[0].mxu0
    %v654 = vadd.f32 %v90, %v653
    %v655 = vpop.f32.mrb[0].mxu0
    %v656 = vpop.f32.mrb[0].mxu0
    %v657 = vpop.f32.mrb[0].mxu0
    %658 = vdwg.mxu0
    %v659 = vxor.u32 %v654, 2147483648
    %v660 = vmul.f32 %v659, 1.442695
    %v661 = vpow.pop %v660
    %v662 = vadd.f32 %v661, 1.0
    %v663 = vrcp.pop %v662
    %v664 = vmul.f32 1.0, %v663
    %v665 = vtanh.pop %v654
    %667 = vrot.lane.b32.xlu0 %v523, 32
    %v668 = vpop.permute.xlu0 %667
    %v670 = vmul.f32 %v664, %v668
    %672 = vrot.lane.b32.xlu0 %v665, 64
    %v673 = vpop.permute.xlu0 %672
    %v675 = vmul.f32 %v664, %v673
    %677 = vrot.lane.b32.xlu0 %v675, 32
    %v678 = vpop.permute.xlu0 %677
    %v680 = vadd.f32 %v670, %v678
    %v681 = vtanh.pop %v680
    %683 = vrot.lane.b32.xlu0 %v681, 64
    %v684 = vpop.permute.xlu0 %683
    %v686 = vmul.f32 %v664, %v684
    %688 = vrot.lane.b32.xlu0 %v686, 32
    %v689 = vpop.permute.xlu0 %688
    %691 = vrot.lane.b32.xlu0 %v529, 64
    %v692 = vpop.permute.xlu0 %691
    %v694 = vsel %vm248, %v689, %v692
    %v695 = vpack.c.bf16 %v694, %v694
    %v697 = vsel %vm158, %v695, 0
    %699 = vmatprep.subr.bf16.mxu0 0
    %700 = vmatpush1.bf16.msra.mxu0 %v461
    %701 = vmatprep.subr.bf16.mxu0 0
    %702 = vmatpush1.bf16.msra.mxu0 %v462
    %703 = vmatprep.subr.bf16.mxu0 0
    %704 = vmatpush1.bf16.msra.mxu0 %v463
    %705 = vmatprep.subr.bf16.mxu0 0
    %706 = vmatpush1.bf16.msra.mxu0 %v464
    %707 = vmatprep.subr.bf16.mxu0 0
    %708 = vmatpush1.bf16.msra.mxu0 0
    %709 = vmatprep.subr.bf16.mxu0 0
    %710 = vmatpush1.bf16.msra.mxu0 0
    %711 = vmatprep.subr.bf16.mxu0 0
    %712 = vmatpush1.bf16.msra.mxu0 0
    %713 = vmatprep.subr.bf16.mxu0 0
    %714 = vmatpush1.bf16.msra.mxu0 0
    %715 = vmatprep.subr.bf16.mxu0 0
    %716 = vmatpush1.bf16.msra.mxu0 0
    %717 = vmatprep.subr.bf16.mxu0 0
    %718 = vmatpush1.bf16.msra.mxu0 0
    %719 = vmatprep.subr.bf16.mxu0 0
    %720 = vmatpush1.bf16.msra.mxu0 0
    %721 = vmatprep.subr.bf16.mxu0 0
    %722 = vmatpush1.bf16.msra.mxu0 0
    %723 = vmatprep.subr.bf16.mxu0 0
    %724 = vmatpush1.bf16.msra.mxu0 0
    %725 = vmatprep.subr.bf16.mxu0 0
    %726 = vmatpush1.bf16.msra.mxu0 0
    %727 = vmatprep.subr.bf16.mxu0 0
    %728 = vmatpush1.bf16.msra.mxu0 0
    %729 = vmatprep.subr.bf16.mxu0 0
    %730 = vmatpush1.bf16.msra.mxu0 0
    %731 = vmatprep.mubr.bf16.mxu0 0
    %732 = vmatmul.mubr.bf16.gmra.mrb[0].mxu0 %v697
    %v733 = vpop.f32.mrb[0].mxu0
    %v734 = vadd.f32 %v92, %v733
    %v735 = vpop.f32.mrb[0].mxu0
    %v736 = vpop.f32.mrb[0].mxu0
    %v737 = vpop.f32.mrb[0].mxu0
    %738 = vdwg.mxu0
    %v739 = vxor.u32 %v734, 2147483648
    %v740 = vmul.f32 %v739, 1.442695
    %v741 = vpow.pop %v740
    %v742 = vadd.f32 %v741, 1.0
    %v743 = vrcp.pop %v742
    %v744 = vmul.f32 1.0, %v743
    %v745 = vtanh.pop %v734
    %747 = vrot.lane.b32.xlu0 %v745, 64
    %v748 = vpop.permute.xlu0 %747
    %v750 = vmul.f32 %v744, %v748
    %v751 = vtanh.pop %v750
    %753 = vrot.lane.b32.xlu0 %v751, 96
    %v754 = vpop.permute.xlu0 %753
    %v756 = vmul.f32 %v744, %v754
    %758 = vrot.lane.b32.xlu0 %v756, 32
    %v759 = vpop.permute.xlu0 %758
    %761 = vst.msk [vmem:[#allocation2 + $0x8] sm:$0xff] %vm248, %v759
    %762 = vrot.lane.b32.xlu0 %v606, 64
    %v763 = vpop.permute.xlu0 %762
    %v765 = vsel %vm248, %v242, %v763
    %v766 = vpack.c.bf16 %v765, %v765
    %v768 = vsel %vm158, %v766, 0
    %770 = vmatprep.subr.bf16.mxu0 0
    %771 = vmatpush1.bf16.msra.mxu0 %v267
    %772 = vmatprep.subr.bf16.mxu0 0
    %773 = vmatpush1.bf16.msra.mxu0 %v268
    %774 = vmatprep.subr.bf16.mxu0 0
    %775 = vmatpush1.bf16.msra.mxu0 %v269
    %776 = vmatprep.subr.bf16.mxu0 0
    %777 = vmatpush1.bf16.msra.mxu0 %v270
    %778 = vmatprep.subr.bf16.mxu0 0
    %779 = vmatpush1.bf16.msra.mxu0 0
    %780 = vmatprep.subr.bf16.mxu0 0
    %781 = vmatpush1.bf16.msra.mxu0 0
    %782 = vmatprep.subr.bf16.mxu0 0
    %783 = vmatpush1.bf16.msra.mxu0 0
    %784 = vmatprep.subr.bf16.mxu0 0
    %785 = vmatpush1.bf16.msra.mxu0 0
    %786 = vmatprep.subr.bf16.mxu0 0
    %787 = vmatpush1.bf16.msra.mxu0 0
    %788 = vmatprep.subr.bf16.mxu0 0
    %789 = vmatpush1.bf16.msra.mxu0 0
    %790 = vmatprep.subr.bf16.mxu0 0
    %791 = vmatpush1.bf16.msra.mxu0 0
    %792 = vmatprep.subr.bf16.mxu0 0
    %793 = vmatpush1.bf16.msra.mxu0 0
    %794 = vmatprep.subr.bf16.mxu0 0
    %795 = vmatpush1.bf16.msra.mxu0 0
    %796 = vmatprep.subr.bf16.mxu0 0
    %797 = vmatpush1.bf16.msra.mxu0 0
    %798 = vmatprep.subr.bf16.mxu0 0
    %799 = vmatpush1.bf16.msra.mxu0 0
    %800 = vmatprep.subr.bf16.mxu0 0
    %801 = vmatpush1.bf16.msra.mxu0 0
    %802 = vmatprep.mubr.bf16.mxu0 0
    %803 = vmatmul.mubr.bf16.gmra.mrb[0].mxu0 %v768
    %v804 = vpop.f32.mrb[0].mxu0
    %v805 = vadd.f32 %v88, %v804
    %v806 = vpop.f32.mrb[0].mxu0
    %v807 = vpop.f32.mrb[0].mxu0
    %v808 = vpop.f32.mrb[0].mxu0
    %809 = vdwg.mxu0
    %v810 = vxor.u32 %v805, 2147483648
    %v811 = vmul.f32 %v810, 1.442695
    %v812 = vpow.pop %v811
    %v813 = vadd.f32 %v812, 1.0
    %v814 = vrcp.pop %v813
    %v815 = vmul.f32 1.0, %v814
    %v816 = vtanh.pop %v805
    %v817 = vmul.f32 %v815, %v600
    %819 = vrot.lane.b32.xlu0 %v816, 64
    %v820 = vpop.permute.xlu0 %819
    %v822 = vmul.f32 %v815, %v820
    %824 = vrot.lane.b32.xlu0 %v822, 32
    %v825 = vpop.permute.xlu0 %824
    %v827 = vadd.f32 %v817, %v825
    %v828 = vtanh.pop %v827
    %830 = vrot.lane.b32.xlu0 %v828, 64
    %v831 = vpop.permute.xlu0 %830
    %v833 = vmul.f32 %v815, %v831
    %835 = vrot.lane.b32.xlu0 %v833, 32
    %v836 = vpop.permute.xlu0 %835
    %838 = vrot.lane.b32.xlu0 %v686, 64
    %v839 = vpop.permute.xlu0 %838
    %v841 = vsel %vm248, %v836, %v839
    %v842 = vpack.c.bf16 %v841, %v841
    %v844 = vsel %vm158, %v842, 0
    %846 = vmatprep.subr.bf16.mxu0 0
    %847 = vmatpush1.bf16.msra.mxu0 %v364
    %848 = vmatprep.subr.bf16.mxu0 0
    %849 = vmatpush1.bf16.msra.mxu0 %v365
    %850 = vmatprep.subr.bf16.mxu0 0
    %851 = vmatpush1.bf16.msra.mxu0 %v366
    %852 = vmatprep.subr.bf16.mxu0 0
    %853 = vmatpush1.bf16.msra.mxu0 %v367
    %854 = vmatprep.subr.bf16.mxu0 0
    %855 = vmatpush1.bf16.msra.mxu0 0
    %856 = vmatprep.subr.bf16.mxu0 0
    %857 = vmatpush1.bf16.msra.mxu0 0
    %858 = vmatprep.subr.bf16.mxu0 0
    %859 = vmatpush1.bf16.msra.mxu0 0
    %860 = vmatprep.subr.bf16.mxu0 0
    %861 = vmatpush1.bf16.msra.mxu0 0
    %862 = vmatprep.subr.bf16.mxu0 0
    %863 = vmatpush1.bf16.msra.mxu0 0
    %864 = vmatprep.subr.bf16.mxu0 0
    %865 = vmatpush1.bf16.msra.mxu0 0
    %866 = vmatprep.subr.bf16.mxu0 0
    %867 = vmatpush1.bf16.msra.mxu0 0
    %868 = vmatprep.subr.bf16.mxu0 0
    %869 = vmatpush1.bf16.msra.mxu0 0
    %870 = vmatprep.subr.bf16.mxu0 0
    %871 = vmatpush1.bf16.msra.mxu0 0
    %872 = vmatprep.subr.bf16.mxu0 0
    %873 = vmatpush1.bf16.msra.mxu0 0
    %874 = vmatprep.subr.bf16.mxu0 0
    %875 = vmatpush1.bf16.msra.mxu0 0
    %876 = vmatprep.subr.bf16.mxu0 0
    %877 = vmatpush1.bf16.msra.mxu0 0
    %878 = vmatprep.mubr.bf16.mxu0 0
    %879 = vmatmul.mubr.bf16.gmra.mrb[0].mxu0 %v844
    %v880 = vpop.f32.mrb[0].mxu0
    %v881 = vadd.f32 %v90, %v880
    %v882 = vpop.f32.mrb[0].mxu0
    %v883 = vpop.f32.mrb[0].mxu0
    %v884 = vpop.f32.mrb[0].mxu0
    %885 = vdwg.mxu0
    %v886 = vxor.u32 %v881, 2147483648
    %v887 = vmul.f32 %v886, 1.442695
    %v888 = vpow.pop %v887
    %v889 = vadd.f32 %v888, 1.0
    %v890 = vrcp.pop %v889
    %v891 = vmul.f32 1.0, %v890
    %v892 = vtanh.pop %v881
    %894 = vrot.lane.b32.xlu0 %v750, 32
    %v895 = vpop.permute.xlu0 %894
    %v897 = vmul.f32 %v891, %v895
    %899 = vrot.lane.b32.xlu0 %v892, 64
    %v900 = vpop.permute.xlu0 %899
    %v902 = vmul.f32 %v891, %v900
    %904 = vrot.lane.b32.xlu0 %v902, 32
    %v905 = vpop.permute.xlu0 %904
    %v907 = vadd.f32 %v897, %v905
    %v908 = vtanh.pop %v907
    %910 = vrot.lane.b32.xlu0 %v908, 64
    %v911 = vpop.permute.xlu0 %910
    %v913 = vmul.f32 %v891, %v911
    %915 = vrot.lane.b32.xlu0 %v913, 32
    %v916 = vpop.permute.xlu0 %915
    %918 = vrot.lane.b32.xlu0 %v756, 64
    %v919 = vpop.permute.xlu0 %918
    %v921 = vsel %vm248, %v916, %v919
    %v922 = vpack.c.bf16 %v921, %v921
    %v924 = vsel %vm158, %v922, 0
    %926 = vmatprep.subr.bf16.mxu0 0
    %927 = vmatpush1.bf16.msra.mxu0 %v461
    %928 = vmatprep.subr.bf16.mxu0 0
    %929 = vmatpush1.bf16.msra.mxu0 %v462
    %930 = vmatprep.subr.bf16.mxu0 0
    %931 = vmatpush1.bf16.msra.mxu0 %v463
    %932 = vmatprep.subr.bf16.mxu0 0
    %933 = vmatpush1.bf16.msra.mxu0 %v464
    %934 = vmatprep.subr.bf16.mxu0 0
    %935 = vmatpush1.bf16.msra.mxu0 0
    %936 = vmatprep.subr.bf16.mxu0 0
    %937 = vmatpush1.bf16.msra.mxu0 0
    %938 = vmatprep.subr.bf16.mxu0 0
    %939 = vmatpush1.bf16.msra.mxu0 0
    %940 = vmatprep.subr.bf16.mxu0 0
    %941 = vmatpush1.bf16.msra.mxu0 0
    %942 = vmatprep.subr.bf16.mxu0 0
    %943 = vmatpush1.bf16.msra.mxu0 0
    %944 = vmatprep.subr.bf16.mxu0 0
    %945 = vmatpush1.bf16.msra.mxu0 0
    %946 = vmatprep.subr.bf16.mxu0 0
    %947 = vmatpush1.bf16.msra.mxu0 0
    %948 = vmatprep.subr.bf16.mxu0 0
    %949 = vmatpush1.bf16.msra.mxu0 0
    %950 = vmatprep.subr.bf16.mxu0 0
    %951 = vmatpush1.bf16.msra.mxu0 0
    %952 = vmatprep.subr.bf16.mxu0 0
    %953 = vmatpush1.bf16.msra.mxu0 0
    %954 = vmatprep.subr.bf16.mxu0 0
    %955 = vmatpush1.bf16.msra.mxu0 0
    %956 = vmatprep.subr.bf16.mxu0 0
    %957 = vmatpush1.bf16.msra.mxu0 0
    %958 = vmatprep.mubr.bf16.mxu0 0
    %959 = vmatmul.mubr.bf16.gmra.mrb[0].mxu0 %v924
    %v960 = vpop.f32.mrb[0].mxu0
    %v961 = vadd.f32 %v92, %v960
    %v962 = vpop.f32.mrb[0].mxu0
    %v963 = vpop.f32.mrb[0].mxu0
    %v964 = vpop.f32.mrb[0].mxu0
    %965 = vdwg.mxu0
    %v966 = vxor.u32 %v961, 2147483648
    %v967 = vmul.f32 %v966, 1.442695
    %v968 = vpow.pop %v967
    %v969 = vadd.f32 %v968, 1.0
    %v970 = vrcp.pop %v969
    %v971 = vmul.f32 1.0, %v970
    %v972 = vtanh.pop %v961
    %974 = vrot.lane.b32.xlu0 %v972, 64
    %v975 = vpop.permute.xlu0 %974
    %v977 = vmul.f32 %v971, %v975
    %v978 = vtanh.pop %v977
    %980 = vrot.lane.b32.xlu0 %v978, 96
    %v981 = vpop.permute.xlu0 %980
    %v983 = vmul.f32 %v971, %v981
    %985 = vrot.lane.b32.xlu0 %v983, 32
    %v986 = vpop.permute.xlu0 %985
    %988 = vst.msk [vmem:[#allocation2 + $0x10] sm:$0xff] %vm248, %v986
    %989 = vrot.lane.b32.xlu0 %v833, 64
    %v990 = vpop.permute.xlu0 %989
    %v992 = vsel %vm248, %v243, %v990
    %v993 = vpack.c.bf16 %v992, %v992
    %v995 = vsel %vm158, %v993, 0
    %997 = vmatprep.subr.bf16.mxu0 0
    %998 = vmatpush1.bf16.msra.mxu0 %v267
    %999 = vmatprep.subr.bf16.mxu0 0
    %1000 = vmatpush1.bf16.msra.mxu0 %v268
    %1001 = vmatprep.subr.bf16.mxu0 0
    %1002 = vmatpush1.bf16.msra.mxu0 %v269
    %1003 = vmatprep.subr.bf16.mxu0 0
    %1004 = vmatpush1.bf16.msra.mxu0 %v270
    %1005 = vmatprep.subr.bf16.mxu0 0
    %1006 = vmatpush1.bf16.msra.mxu0 0
    %1007 = vmatprep.subr.bf16.mxu0 0
    %1008 = vmatpush1.bf16.msra.mxu0 0
    %1009 = vmatprep.subr.bf16.mxu0 0
    %1010 = vmatpush1.bf16.msra.mxu0 0
    %1011 = vmatprep.subr.bf16.mxu0 0
    %1012 = vmatpush1.bf16.msra.mxu0 0
    %1013 = vmatprep.subr.bf16.mxu0 0
    %1014 = vmatpush1.bf16.msra.mxu0 0
    %1015 = vmatprep.subr.bf16.mxu0 0
    %1016 = vmatpush1.bf16.msra.mxu0 0
    %1017 = vmatprep.subr.bf16.mxu0 0
    %1018 = vmatpush1.bf16.msra.mxu0 0
    %1019 = vmatprep.subr.bf16.mxu0 0
    %1020 = vmatpush1.bf16.msra.mxu0 0
    %1021 = vmatprep.subr.bf16.mxu0 0
    %1022 = vmatpush1.bf16.msra.mxu0 0
    %1023 = vmatprep.subr.bf16.mxu0 0
    %1024 = vmatpush1.bf16.msra.mxu0 0
    %1025 = vmatprep.subr.bf16.mxu0 0
    %1026 = vmatpush1.bf16.msra.mxu0 0
    %1027 = vmatprep.subr.bf16.mxu0 0
    %1028 = vmatpush1.bf16.msra.mxu0 0
    %1029 = vmatprep.mubr.bf16.mxu0 0
    %1030 = vmatmul.mubr.bf16.gmra.mrb[0].mxu0 %v995
    %v1031 = vpop.f32.mrb[0].mxu0
    %v1032 = vadd.f32 %v88, %v1031
    %v1033 = vpop.f32.mrb[0].mxu0
    %v1034 = vpop.f32.mrb[0].mxu0
    %v1035 = vpop.f32.mrb[0].mxu0
    %1036 = vdwg.mxu0
    %v1037 = vxor.u32 %v1032, 2147483648
    %v1038 = vmul.f32 %v1037, 1.442695
    %v1039 = vpow.pop %v1038
    %v1040 = vadd.f32 %v1039, 1.0
    %v1041 = vrcp.pop %v1040
    %v1042 = vmul.f32 1.0, %v1041
    %v1043 = vtanh.pop %v1032
    %v1044 = vmul.f32 %v1042, %v827
    %1046 = vrot.lane.b32.xlu0 %v1043, 64
    %v1047 = vpop.permute.xlu0 %1046
    %v1049 = vmul.f32 %v1042, %v1047
    %1051 = vrot.lane.b32.xlu0 %v1049, 32
    %v1052 = vpop.permute.xlu0 %1051
    %v1054 = vadd.f32 %v1044, %v1052
    %v1055 = vtanh.pop %v1054
    %1057 = vrot.lane.b32.xlu0 %v1055, 64
    %v1058 = vpop.permute.xlu0 %1057
    %v1060 = vmul.f32 %v1042, %v1058
    %1062 = vrot.lane.b32.xlu0 %v1060, 32
    %v1063 = vpop.permute.xlu0 %1062
    %1065 = vrot.lane.b32.xlu0 %v913, 64
    %v1066 = vpop.permute.xlu0 %1065
    %v1068 = vsel %vm248, %v1063, %v1066
    %v1069 = vpack.c.bf16 %v1068, %v1068
    %v1071 = vsel %vm158, %v1069, 0
    %1073 = vmatprep.subr.bf16.mxu0 0
    %1074 = vmatpush1.bf16.msra.mxu0 %v364
    %1075 = vmatprep.subr.bf16.mxu0 0
    %1076 = vmatpush1.bf16.msra.mxu0 %v365
    %1077 = vmatprep.subr.bf16.mxu0 0
    %1078 = vmatpush1.bf16.msra.mxu0 %v366
    %1079 = vmatprep.subr.bf16.mxu0 0
    %1080 = vmatpush1.bf16.msra.mxu0 %v367
    %1081 = vmatprep.subr.bf16.mxu0 0
    %1082 = vmatpush1.bf16.msra.mxu0 0
    %1083 = vmatprep.subr.bf16.mxu0 0
    %1084 = vmatpush1.bf16.msra.mxu0 0
    %1085 = vmatprep.subr.bf16.mxu0 0
    %1086 = vmatpush1.bf16.msra.mxu0 0
    %1087 = vmatprep.subr.bf16.mxu0 0
    %1088 = vmatpush1.bf16.msra.mxu0 0
    %1089 = vmatprep.subr.bf16.mxu0 0
    %1090 = vmatpush1.bf16.msra.mxu0 0
    %1091 = vmatprep.subr.bf16.mxu0 0
    %1092 = vmatpush1.bf16.msra.mxu0 0
    %1093 = vmatprep.subr.bf16.mxu0 0
    %1094 = vmatpush1.bf16.msra.mxu0 0
    %1095 = vmatprep.subr.bf16.mxu0 0
    %1096 = vmatpush1.bf16.msra.mxu0 0
    %1097 = vmatprep.subr.bf16.mxu0 0
    %1098 = vmatpush1.bf16.msra.mxu0 0
    %1099 = vmatprep.subr.bf16.mxu0 0
    %1100 = vmatpush1.bf16.msra.mxu0 0
    %1101 = vmatprep.subr.bf16.mxu0 0
    %1102 = vmatpush1.bf16.msra.mxu0 0
    %1103 = vmatprep.subr.bf16.mxu0 0
    %1104 = vmatpush1.bf16.msra.mxu0 0
    %1105 = vmatprep.mubr.bf16.mxu0 0
    %1106 = vmatmul.mubr.bf16.gmra.mrb[0].mxu0 %v1071
    %v1107 = vpop.f32.mrb[0].mxu0
    %v1108 = vadd.f32 %v90, %v1107
    %v1109 = vpop.f32.mrb[0].mxu0
    %v1110 = vpop.f32.mrb[0].mxu0
    %v1111 = vpop.f32.mrb[0].mxu0
    %1112 = vdwg.mxu0
    %v1113 = vxor.u32 %v1108, 2147483648
    %v1114 = vmul.f32 %v1113, 1.442695
    %v1115 = vpow.pop %v1114
    %v1116 = vadd.f32 %v1115, 1.0
    %v1117 = vrcp.pop %v1116
    %v1118 = vmul.f32 1.0, %v1117
    %v1119 = vtanh.pop %v1108
    %1121 = vrot.lane.b32.xlu0 %v977, 32
    %v1122 = vpop.permute.xlu0 %1121
    %v1124 = vmul.f32 %v1118, %v1122
    %1126 = vrot.lane.b32.xlu0 %v1119, 64
    %v1127 = vpop.permute.xlu0 %1126
    %v1129 = vmul.f32 %v1118, %v1127
    %1131 = vrot.lane.b32.xlu0 %v1129, 32
    %v1132 = vpop.permute.xlu0 %1131
    %v1134 = vadd.f32 %v1124, %v1132
    %v1135 = vtanh.pop %v1134
    %1137 = vrot.lane.b32.xlu0 %v1135, 64
    %v1138 = vpop.permute.xlu0 %1137
    %v1140 = vmul.f32 %v1118, %v1138
    %1142 = vrot.lane.b32.xlu0 %v1140, 32
    %v1143 = vpop.permute.xlu0 %1142
    %1145 = vrot.lane.b32.xlu0 %v983, 64
    %v1146 = vpop.permute.xlu0 %1145
    %v1148 = vsel %vm248, %v1143, %v1146
    %v1149 = vpack.c.bf16 %v1148, %v1148
    %v1151 = vsel %vm158, %v1149, 0
    %1153 = vmatprep.subr.bf16.mxu0 0
    %1154 = vmatpush1.bf16.msra.mxu0 %v461
    %1155 = vmatprep.subr.bf16.mxu0 0
    %1156 = vmatpush1.bf16.msra.mxu0 %v462
    %1157 = vmatprep.subr.bf16.mxu0 0
    %1158 = vmatpush1.bf16.msra.mxu0 %v463
    %1159 = vmatprep.subr.bf16.mxu0 0
    %1160 = vmatpush1.bf16.msra.mxu0 %v464
    %1161 = vmatprep.subr.bf16.mxu0 0
    %1162 = vmatpush1.bf16.msra.mxu0 0
    %1163 = vmatprep.subr.bf16.mxu0 0
    %1164 = vmatpush1.bf16.msra.mxu0 0
    %1165 = vmatprep.subr.bf16.mxu0 0
    %1166 = vmatpush1.bf16.msra.mxu0 0
    %1167 = vmatprep.subr.bf16.mxu0 0
    %1168 = vmatpush1.bf16.msra.mxu0 0
    %1169 = vmatprep.subr.bf16.mxu0 0
    %1170 = vmatpush1.bf16.msra.mxu0 0
    %1171 = vmatprep.subr.bf16.mxu0 0
    %1172 = vmatpush1.bf16.msra.mxu0 0
    %1173 = vmatprep.subr.bf16.mxu0 0
    %1174 = vmatpush1.bf16.msra.mxu0 0
    %1175 = vmatprep.subr.bf16.mxu0 0
    %1176 = vmatpush1.bf16.msra.mxu0 0
    %1177 = vmatprep.subr.bf16.mxu0 0
    %1178 = vmatpush1.bf16.msra.mxu0 0
    %1179 = vmatprep.subr.bf16.mxu0 0
    %1180 = vmatpush1.bf16.msra.mxu0 0
    %1181 = vmatprep.subr.bf16.mxu0 0
    %1182 = vmatpush1.bf16.msra.mxu0 0
    %1183 = vmatprep.subr.bf16.mxu0 0
    %1184 = vmatpush1.bf16.msra.mxu0 0
    %1185 = vmatprep.mubr.bf16.mxu0 0
    %1186 = vmatmul.mubr.bf16.gmra.mrb[0].mxu0 %v1151
    %v1187 = vpop.f32.mrb[0].mxu0
    %v1188 = vadd.f32 %v92, %v1187
    %v1189 = vpop.f32.mrb[0].mxu0
    %v1190 = vpop.f32.mrb[0].mxu0
    %v1191 = vpop.f32.mrb[0].mxu0
    %1192 = vdwg.mxu0
    %v1193 = vxor.u32 %v1188, 2147483648
    %v1194 = vmul.f32 %v1193, 1.442695
    %v1195 = vpow.pop %v1194
    %v1196 = vadd.f32 %v1195, 1.0
    %v1197 = vrcp.pop %v1196
    %v1198 = vmul.f32 1.0, %v1197
    %v1199 = vtanh.pop %v1188
    %1201 = vrot.lane.b32.xlu0 %v1199, 64
    %v1202 = vpop.permute.xlu0 %1201
    %v1204 = vmul.f32 %v1198, %v1202
    %v1205 = vtanh.pop %v1204
    %1207 = vrot.lane.b32.xlu0 %v1205, 96
    %v1208 = vpop.permute.xlu0 %1207
    %v1210 = vmul.f32 %v1198, %v1208
    %1212 = vrot.lane.b32.xlu0 %v1210, 32
    %v1213 = vpop.permute.xlu0 %1212
    %1215 = vst.msk [vmem:[#allocation2 + $0x18] sm:$0xff] %vm248, %v1213
    %1216 = vrot.lane.b32.xlu0 %v1060, 64
    %v1217 = vpop.permute.xlu0 %1216
    %v1219 = vsel %vm248, %v244, %v1217
    %v1220 = vpack.c.bf16 %v1219, %v1219
    %v1222 = vsel %vm158, %v1220, 0
    %1224 = vmatprep.subr.bf16.mxu0 0
    %1225 = vmatpush1.bf16.msra.mxu0 %v267
    %1226 = vmatprep.subr.bf16.mxu0 0
    %1227 = vmatpush1.bf16.msra.mxu0 %v268
    %1228 = vmatprep.subr.bf16.mxu0 0
    %1229 = vmatpush1.bf16.msra.mxu0 %v269
    %1230 = vmatprep.subr.bf16.mxu0 0
    %1231 = vmatpush1.bf16.msra.mxu0 %v270
    %1232 = vmatprep.subr.bf16.mxu0 0
    %1233 = vmatpush1.bf16.msra.mxu0 0
    %1234 = vmatprep.subr.bf16.mxu0 0
    %1235 = vmatpush1.bf16.msra.mxu0 0
    %1236 = vmatprep.subr.bf16.mxu0 0
    %1237 = vmatpush1.bf16.msra.mxu0 0
    %1238 = vmatprep.subr.bf16.mxu0 0
    %1239 = vmatpush1.bf16.msra.mxu0 0
    %1240 = vmatprep.subr.bf16.mxu0 0
    %1241 = vmatpush1.bf16.msra.mxu0 0
    %1242 = vmatprep.subr.bf16.mxu0 0
    %1243 = vmatpush1.bf16.msra.mxu0 0
    %1244 = vmatprep.subr.bf16.mxu0 0
    %1245 = vmatpush1.bf16.msra.mxu0 0
    %1246 = vmatprep.subr.bf16.mxu0 0
    %1247 = vmatpush1.bf16.msra.mxu0 0
    %1248 = vmatprep.subr.bf16.mxu0 0
    %1249 = vmatpush1.bf16.msra.mxu0 0
    %1250 = vmatprep.subr.bf16.mxu0 0
    %1251 = vmatpush1.bf16.msra.mxu0 0
    %1252 = vmatprep.subr.bf16.mxu0 0
    %1253 = vmatpush1.bf16.msra.mxu0 0
    %1254 = vmatprep.subr.bf16.mxu0 0
    %1255 = vmatpush1.bf16.msra.mxu0 0
    %1256 = vmatprep.mubr.bf16.mxu0 0
    %1257 = vmatmul.mubr.bf16.gmra.mrb[0].mxu0 %v1222
    %v1258 = vpop.f32.mrb[0].mxu0
    %v1259 = vadd.f32 %v88, %v1258
    %v1260 = vpop.f32.mrb[0].mxu0
    %v1261 = vpop.f32.mrb[0].mxu0
    %v1262 = vpop.f32.mrb[0].mxu0
    %1263 = vdwg.mxu0
    %v1264 = vxor.u32 %v1259, 2147483648
    %v1265 = vmul.f32 %v1264, 1.442695
    %v1266 = vpow.pop %v1265
    %v1267 = vadd.f32 %v1266, 1.0
    %v1268 = vrcp.pop %v1267
    %v1269 = vmul.f32 1.0, %v1268
    %v1270 = vtanh.pop %v1259
    %v1271 = vmul.f32 %v1269, %v1054
    %1273 = vrot.lane.b32.xlu0 %v1270, 64
    %v1274 = vpop.permute.xlu0 %1273
    %v1276 = vmul.f32 %v1269, %v1274
    %1278 = vrot.lane.b32.xlu0 %v1276, 32
    %v1279 = vpop.permute.xlu0 %1278
    %v1281 = vadd.f32 %v1271, %v1279
    %v1282 = vtanh.pop %v1281
    %1284 = vrot.lane.b32.xlu0 %v1282, 64
    %v1285 = vpop.permute.xlu0 %1284
    %v1287 = vmul.f32 %v1269, %v1285
    %1289 = vrot.lane.b32.xlu0 %v1287, 32
    %v1290 = vpop.permute.xlu0 %1289
    %1292 = vrot.lane.b32.xlu0 %v1140, 64
    %v1293 = vpop.permute.xlu0 %1292
    %v1295 = vsel %vm248, %v1290, %v1293
    %v1296 = vpack.c.bf16 %v1295, %v1295
    %v1298 = vsel %vm158, %v1296, 0
    %1300 = vmatprep.subr.bf16.mxu0 0
    %1301 = vmatpush1.bf16.msra.mxu0 %v364
    %1302 = vmatprep.subr.bf16.mxu0 0
    %1303 = vmatpush1.bf16.msra.mxu0 %v365
    %1304 = vmatprep.subr.bf16.mxu0 0
    %1305 = vmatpush1.bf16.msra.mxu0 %v366
    %1306 = vmatprep.subr.bf16.mxu0 0
    %1307 = vmatpush1.bf16.msra.mxu0 %v367
    %1308 = vmatprep.subr.bf16.mxu0 0
    %1309 = vmatpush1.bf16.msra.mxu0 0
    %1310 = vmatprep.subr.bf16.mxu0 0
    %1311 = vmatpush1.bf16.msra.mxu0 0
    %1312 = vmatprep.subr.bf16.mxu0 0
    %1313 = vmatpush1.bf16.msra.mxu0 0
    %1314 = vmatprep.subr.bf16.mxu0 0
    %1315 = vmatpush1.bf16.msra.mxu0 0
    %1316 = vmatprep.subr.bf16.mxu0 0
    %1317 = vmatpush1.bf16.msra.mxu0 0
    %1318 = vmatprep.subr.bf16.mxu0 0
    %1319 = vmatpush1.bf16.msra.mxu0 0
    %1320 = vmatprep.subr.bf16.mxu0 0
    %1321 = vmatpush1.bf16.msra.mxu0 0
    %1322 = vmatprep.subr.bf16.mxu0 0
    %1323 = vmatpush1.bf16.msra.mxu0 0
    %1324 = vmatprep.subr.bf16.mxu0 0
    %1325 = vmatpush1.bf16.msra.mxu0 0
    %1326 = vmatprep.subr.bf16.mxu0 0
    %1327 = vmatpush1.bf16.msra.mxu0 0
    %1328 = vmatprep.subr.bf16.mxu0 0
    %1329 = vmatpush1.bf16.msra.mxu0 0
    %1330 = vmatprep.subr.bf16.mxu0 0
    %1331 = vmatpush1.bf16.msra.mxu0 0
    %1332 = vmatprep.mubr.bf16.mxu0 0
    %1333 = vmatmul.mubr.bf16.gmra.mrb[0].mxu0 %v1298
    %v1334 = vpop.f32.mrb[0].mxu0
    %v1335 = vadd.f32 %v90, %v1334
    %v1336 = vpop.f32.mrb[0].mxu0
    %v1337 = vpop.f32.mrb[0].mxu0
    %v1338 = vpop.f32.mrb[0].mxu0
    %1339 = vdwg.mxu0
    %v1340 = vxor.u32 %v1335, 2147483648
    %v1341 = vmul.f32 %v1340, 1.442695
    %v1342 = vpow.pop %v1341
    %v1343 = vadd.f32 %v1342, 1.0
    %v1344 = vrcp.pop %v1343
    %v1345 = vmul.f32 1.0, %v1344
    %v1346 = vtanh.pop %v1335
    %1348 = vrot.lane.b32.xlu0 %v1204, 32
    %v1349 = vpop.permute.xlu0 %1348
    %v1351 = vmul.f32 %v1345, %v1349
    %1353 = vrot.lane.b32.xlu0 %v1346, 64
    %v1354 = vpop.permute.xlu0 %1353
    %v1356 = vmul.f32 %v1345, %v1354
    %1358 = vrot.lane.b32.xlu0 %v1356, 32
    %v1359 = vpop.permute.xlu0 %1358
    %v1361 = vadd.f32 %v1351, %v1359
    %v1362 = vtanh.pop %v1361
    %1364 = vrot.lane.b32.xlu0 %v1362, 64
    %v1365 = vpop.permute.xlu0 %1364
    %v1367 = vmul.f32 %v1345, %v1365
    %1369 = vrot.lane.b32.xlu0 %v1367, 32
    %v1370 = vpop.permute.xlu0 %1369
    %1372 = vrot.lane.b32.xlu0 %v1210, 64
    %v1373 = vpop.permute.xlu0 %1372
    %v1375 = vsel %vm248, %v1370, %v1373
    %v1376 = vpack.c.bf16 %v1375, %v1375
    %v1378 = vsel %vm158, %v1376, 0
    %1380 = vmatprep.subr.bf16.mxu0 0
    %1381 = vmatpush1.bf16.msra.mxu0 %v461
    %1382 = vmatprep.subr.bf16.mxu0 0
    %1383 = vmatpush1.bf16.msra.mxu0 %v462
    %1384 = vmatprep.subr.bf16.mxu0 0
    %1385 = vmatpush1.bf16.msra.mxu0 %v463
    %1386 = vmatprep.subr.bf16.mxu0 0
    %1387 = vmatpush1.bf16.msra.mxu0 %v464
    %1388 = vmatprep.subr.bf16.mxu0 0
    %1389 = vmatpush1.bf16.msra.mxu0 0
    %1390 = vmatprep.subr.bf16.mxu0 0
    %1391 = vmatpush1.bf16.msra.mxu0 0
    %1392 = vmatprep.subr.bf16.mxu0 0
    %1393 = vmatpush1.bf16.msra.mxu0 0
    %1394 = vmatprep.subr.bf16.mxu0 0
    %1395 = vmatpush1.bf16.msra.mxu0 0
    %1396 = vmatprep.subr.bf16.mxu0 0
    %1397 = vmatpush1.bf16.msra.mxu0 0
    %1398 = vmatprep.subr.bf16.mxu0 0
    %1399 = vmatpush1.bf16.msra.mxu0 0
    %1400 = vmatprep.subr.bf16.mxu0 0
    %1401 = vmatpush1.bf16.msra.mxu0 0
    %1402 = vmatprep.subr.bf16.mxu0 0
    %1403 = vmatpush1.bf16.msra.mxu0 0
    %1404 = vmatprep.subr.bf16.mxu0 0
    %1405 = vmatpush1.bf16.msra.mxu0 0
    %1406 = vmatprep.subr.bf16.mxu0 0
    %1407 = vmatpush1.bf16.msra.mxu0 0
    %1408 = vmatprep.subr.bf16.mxu0 0
    %1409 = vmatpush1.bf16.msra.mxu0 0
    %1410 = vmatprep.subr.bf16.mxu0 0
    %1411 = vmatpush1.bf16.msra.mxu0 0
    %1412 = vmatprep.mubr.bf16.mxu0 0
    %1413 = vmatmul.mubr.bf16.gmra.mrb[0].mxu0 %v1378
    %v1414 = vpop.f32.mrb[0].mxu0
    %v1415 = vadd.f32 %v92, %v1414
    %v1416 = vpop.f32.mrb[0].mxu0
    %v1417 = vpop.f32.mrb[0].mxu0
    %v1418 = vpop.f32.mrb[0].mxu0
    %1419 = vdwg.mxu0
    %v1420 = vxor.u32 %v1415, 2147483648
    %v1421 = vmul.f32 %v1420, 1.442695
    %v1422 = vpow.pop %v1421
    %v1423 = vadd.f32 %v1422, 1.0
    %v1424 = vrcp.pop %v1423
    %v1425 = vmul.f32 1.0, %v1424
    %v1426 = vtanh.pop %v1415
    %1428 = vrot.lane.b32.xlu0 %v1426, 64
    %v1429 = vpop.permute.xlu0 %1428
    %v1431 = vmul.f32 %v1425, %v1429
    %v1432 = vtanh.pop %v1431
    %1434 = vrot.lane.b32.xlu0 %v1432, 96
    %v1435 = vpop.permute.xlu0 %1434
    %v1437 = vmul.f32 %v1425, %v1435
    %1439 = vrot.lane.b32.xlu0 %v1437, 32
    %v1440 = vpop.permute.xlu0 %1439
    %1442 = vst.msk [vmem:[#allocation2 + $0x20] sm:$0xff] %vm248, %v1440
    %1443 = vrot.lane.b32.xlu0 %v1287, 64
    %v1444 = vpop.permute.xlu0 %1443
    %v1446 = vsel %vm248, %v245, %v1444
    %v1447 = vpack.c.bf16 %v1446, %v1446
    %v1449 = vsel %vm158, %v1447, 0
    %1451 = vmatprep.subr.bf16.mxu0 0
    %1452 = vmatpush1.bf16.msra.mxu0 %v267
    %1453 = vmatprep.subr.bf16.mxu0 0
    %1454 = vmatpush1.bf16.msra.mxu0 %v268
    %1455 = vmatprep.subr.bf16.mxu0 0
    %1456 = vmatpush1.bf16.msra.mxu0 %v269
    %1457 = vmatprep.subr.bf16.mxu0 0
    %1458 = vmatpush1.bf16.msra.mxu0 %v270
    %1459 = vmatprep.subr.bf16.mxu0 0
    %1460 = vmatpush1.bf16.msra.mxu0 0
    %1461 = vmatprep.subr.bf16.mxu0 0
    %1462 = vmatpush1.bf16.msra.mxu0 0
    %1463 = vmatprep.subr.bf16.mxu0 0
    %1464 = vmatpush1.bf16.msra.mxu0 0
    %1465 = vmatprep.subr.bf16.mxu0 0
    %1466 = vmatpush1.bf16.msra.mxu0 0
    %1467 = vmatprep.subr.bf16.mxu0 0
    %1468 = vmatpush1.bf16.msra.mxu0 0
    %1469 = vmatprep.subr.bf16.mxu0 0
    %1470 = vmatpush1.bf16.msra.mxu0 0
    %1471 = vmatprep.subr.bf16.mxu0 0
    %1472 = vmatpush1.bf16.msra.mxu0 0
    %1473 = vmatprep.subr.bf16.mxu0 0
    %1474 = vmatpush1.bf16.msra.mxu0 0
    %1475 = vmatprep.subr.bf16.mxu0 0
    %1476 = vmatpush1.bf16.msra.mxu0 0
    %1477 = vmatprep.subr.bf16.mxu0 0
    %1478 = vmatpush1.bf16.msra.mxu0 0
    %1479 = vmatprep.subr.bf16.mxu0 0
    %1480 = vmatpush1.bf16.msra.mxu0 0
    %1481 = vmatprep.subr.bf16.mxu0 0
    %1482 = vmatpush1.bf16.msra.mxu0 0
    %1483 = vmatprep.mubr.bf16.mxu0 0
    %1484 = vmatmul.mubr.bf16.gmra.mrb[0].mxu0 %v1449
    %v1485 = vpop.f32.mrb[0].mxu0
    %v1486 = vadd.f32 %v88, %v1485
    %v1487 = vpop.f32.mrb[0].mxu0
    %v1488 = vpop.f32.mrb[0].mxu0
    %v1489 = vpop.f32.mrb[0].mxu0
    %1490 = vdwg.mxu0
    %v1491 = vxor.u32 %v1486, 2147483648
    %v1492 = vmul.f32 %v1491, 1.442695
    %v1493 = vpow.pop %v1492
    %v1494 = vadd.f32 %v1493, 1.0
    %v1495 = vrcp.pop %v1494
    %v1496 = vmul.f32 1.0, %v1495
    %v1497 = vtanh.pop %v1486
    %v1498 = vmul.f32 %v1496, %v1281
    %1500 = vrot.lane.b32.xlu0 %v1497, 64
    %v1501 = vpop.permute.xlu0 %1500
    %v1503 = vmul.f32 %v1496, %v1501
    %1505 = vrot.lane.b32.xlu0 %v1503, 32
    %v1506 = vpop.permute.xlu0 %1505
    %v1508 = vadd.f32 %v1498, %v1506
    %v1509 = vtanh.pop %v1508
    %1511 = vrot.lane.b32.xlu0 %v1509, 64
    %v1512 = vpop.permute.xlu0 %1511
    %v1514 = vmul.f32 %v1496, %v1512
    %1516 = vrot.lane.b32.xlu0 %v1514, 32
    %v1517 = vpop.permute.xlu0 %1516
    %1519 = vrot.lane.b32.xlu0 %v1367, 64
    %v1520 = vpop.permute.xlu0 %1519
    %v1522 = vsel %vm248, %v1517, %v1520
    %v1523 = vpack.c.bf16 %v1522, %v1522
    %v1525 = vsel %vm158, %v1523, 0
    %1527 = vmatprep.subr.bf16.mxu0 0
    %1528 = vmatpush1.bf16.msra.mxu0 %v364
    %1529 = vmatprep.subr.bf16.mxu0 0
    %1530 = vmatpush1.bf16.msra.mxu0 %v365
    %1531 = vmatprep.subr.bf16.mxu0 0
    %1532 = vmatpush1.bf16.msra.mxu0 %v366
    %1533 = vmatprep.subr.bf16.mxu0 0
    %1534 = vmatpush1.bf16.msra.mxu0 %v367
    %1535 = vmatprep.subr.bf16.mxu0 0
    %1536 = vmatpush1.bf16.msra.mxu0 0
    %1537 = vmatprep.subr.bf16.mxu0 0
    %1538 = vmatpush1.bf16.msra.mxu0 0
    %1539 = vmatprep.subr.bf16.mxu0 0
    %1540 = vmatpush1.bf16.msra.mxu0 0
    %1541 = vmatprep.subr.bf16.mxu0 0
    %1542 = vmatpush1.bf16.msra.mxu0 0
    %1543 = vmatprep.subr.bf16.mxu0 0
    %1544 = vmatpush1.bf16.msra.mxu0 0
    %1545 = vmatprep.subr.bf16.mxu0 0
    %1546 = vmatpush1.bf16.msra.mxu0 0
    %1547 = vmatprep.subr.bf16.mxu0 0
    %1548 = vmatpush1.bf16.msra.mxu0 0
    %1549 = vmatprep.subr.bf16.mxu0 0
    %1550 = vmatpush1.bf16.msra.mxu0 0
    %1551 = vmatprep.subr.bf16.mxu0 0
    %1552 = vmatpush1.bf16.msra.mxu0 0
    %1553 = vmatprep.subr.bf16.mxu0 0
    %1554 = vmatpush1.bf16.msra.mxu0 0
    %1555 = vmatprep.subr.bf16.mxu0 0
    %1556 = vmatpush1.bf16.msra.mxu0 0
    %1557 = vmatprep.subr.bf16.mxu0 0
    %1558 = vmatpush1.bf16.msra.mxu0 0
    %1559 = vmatprep.mubr.bf16.mxu0 0
    %1560 = vmatmul.mubr.bf16.gmra.mrb[0].mxu0 %v1525
    %v1561 = vpop.f32.mrb[0].mxu0
    %v1562 = vadd.f32 %v90, %v1561
    %v1563 = vpop.f32.mrb[0].mxu0
    %v1564 = vpop.f32.mrb[0].mxu0
    %v1565 = vpop.f32.mrb[0].mxu0
    %1566 = vdwg.mxu0
    %v1567 = vxor.u32 %v1562, 2147483648
    %v1568 = vmul.f32 %v1567, 1.442695
    %v1569 = vpow.pop %v1568
    %v1570 = vadd.f32 %v1569, 1.0
    %v1571 = vrcp.pop %v1570
    %v1572 = vmul.f32 1.0, %v1571
    %v1573 = vtanh.pop %v1562
    %1575 = vrot.lane.b32.xlu0 %v1431, 32
    %v1576 = vpop.permute.xlu0 %1575
    %v1578 = vmul.f32 %v1572, %v1576
    %1580 = vrot.lane.b32.xlu0 %v1573, 64
    %v1581 = vpop.permute.xlu0 %1580
    %v1583 = vmul.f32 %v1572, %v1581
    %1585 = vrot.lane.b32.xlu0 %v1583, 32
    %v1586 = vpop.permute.xlu0 %1585
    %v1588 = vadd.f32 %v1578, %v1586
    %v1589 = vtanh.pop %v1588
    %1591 = vrot.lane.b32.xlu0 %v1589, 64
    %v1592 = vpop.permute.xlu0 %1591
    %v1594 = vmul.f32 %v1572, %v1592
    %1596 = vrot.lane.b32.xlu0 %v1594, 32
    %v1597 = vpop.permute.xlu0 %1596
    %1599 = vrot.lane.b32.xlu0 %v1437, 64
    %v1600 = vpop.permute.xlu0 %1599
    %v1602 = vsel %vm248, %v1597, %v1600
    %v1603 = vpack.c.bf16 %v1602, %v1602
    %v1605 = vsel %vm158, %v1603, 0
    %1607 = vmatprep.subr.bf16.mxu0 0
    %1608 = vmatpush1.bf16.msra.mxu0 %v461
    %1609 = vmatprep.subr.bf16.mxu0 0
    %1610 = vmatpush1.bf16.msra.mxu0 %v462
    %1611 = vmatprep.subr.bf16.mxu0 0
    %1612 = vmatpush1.bf16.msra.mxu0 %v463
    %1613 = vmatprep.subr.bf16.mxu0 0
    %1614 = vmatpush1.bf16.msra.mxu0 %v464
    %1615 = vmatprep.subr.bf16.mxu0 0
    %1616 = vmatpush1.bf16.msra.mxu0 0
    %1617 = vmatprep.subr.bf16.mxu0 0
    %1618 = vmatpush1.bf16.msra.mxu0 0
    %1619 = vmatprep.subr.bf16.mxu0 0
    %1620 = vmatpush1.bf16.msra.mxu0 0
    %1621 = vmatprep.subr.bf16.mxu0 0
    %1622 = vmatpush1.bf16.msra.mxu0 0
    %1623 = vmatprep.subr.bf16.mxu0 0
    %1624 = vmatpush1.bf16.msra.mxu0 0
    %1625 = vmatprep.subr.bf16.mxu0 0
    %1626 = vmatpush1.bf16.msra.mxu0 0
    %1627 = vmatprep.subr.bf16.mxu0 0
    %1628 = vmatpush1.bf16.msra.mxu0 0
    %1629 = vmatprep.subr.bf16.mxu0 0
    %1630 = vmatpush1.bf16.msra.mxu0 0
    %1631 = vmatprep.subr.bf16.mxu0 0
    %1632 = vmatpush1.bf16.msra.mxu0 0
    %1633 = vmatprep.subr.bf16.mxu0 0
    %1634 = vmatpush1.bf16.msra.mxu0 0
    %1635 = vmatprep.subr.bf16.mxu0 0
    %1636 = vmatpush1.bf16.msra.mxu0 0
    %1637 = vmatprep.subr.bf16.mxu0 0
    %1638 = vmatpush1.bf16.msra.mxu0 0
    %1639 = vmatprep.mubr.bf16.mxu0 0
    %1640 = vmatmul.mubr.bf16.gmra.mrb[0].mxu0 %v1605
    %v1641 = vpop.f32.mrb[0].mxu0
    %v1642 = vadd.f32 %v92, %v1641
    %v1643 = vpop.f32.mrb[0].mxu0
    %v1644 = vpop.f32.mrb[0].mxu0
    %v1645 = vpop.f32.mrb[0].mxu0
    %1646 = vdwg.mxu0
    %v1647 = vxor.u32 %v1642, 2147483648
    %v1648 = vmul.f32 %v1647, 1.442695
    %v1649 = vpow.pop %v1648
    %v1650 = vadd.f32 %v1649, 1.0
    %v1651 = vrcp.pop %v1650
    %v1652 = vmul.f32 1.0, %v1651
    %v1653 = vtanh.pop %v1642
    %1655 = vrot.lane.b32.xlu0 %v1653, 64
    %v1656 = vpop.permute.xlu0 %1655
    %v1658 = vmul.f32 %v1652, %v1656
    %v1659 = vtanh.pop %v1658
    %1661 = vrot.lane.b32.xlu0 %v1659, 96
    %v1662 = vpop.permute.xlu0 %1661
    %v1664 = vmul.f32 %v1652, %v1662
    %1666 = vrot.lane.b32.xlu0 %v1664, 32
    %v1667 = vpop.permute.xlu0 %1666
    %1669 = vst.msk [vmem:[#allocation2 + $0x28] sm:$0xff] %vm248, %v1667
    %1670 = vrot.lane.b32.xlu0 %v1514, 64
    %v1671 = vpop.permute.xlu0 %1670
    %v1673 = vsel %vm248, %v246, %v1671
    %v1674 = vpack.c.bf16 %v1673, %v1673
    %v1676 = vsel %vm158, %v1674, 0
    %1678 = vmatprep.subr.bf16.mxu0 0
    %1679 = vmatpush1.bf16.msra.mxu0 %v267
    %1680 = vmatprep.subr.bf16.mxu0 0
    %1681 = vmatpush1.bf16.msra.mxu0 %v268
    %1682 = vmatprep.subr.bf16.mxu0 0
    %1683 = vmatpush1.bf16.msra.mxu0 %v269
    %1684 = vmatprep.subr.bf16.mxu0 0
    %1685 = vmatpush1.bf16.msra.mxu0 %v270
    %1686 = vmatprep.subr.bf16.mxu0 0
    %1687 = vmatpush1.bf16.msra.mxu0 0
    %1688 = vmatprep.subr.bf16.mxu0 0
    %1689 = vmatpush1.bf16.msra.mxu0 0
    %1690 = vmatprep.subr.bf16.mxu0 0
    %1691 = vmatpush1.bf16.msra.mxu0 0
    %1692 = vmatprep.subr.bf16.mxu0 0
    %1693 = vmatpush1.bf16.msra.mxu0 0
    %1694 = vmatprep.subr.bf16.mxu0 0
    %1695 = vmatpush1.bf16.msra.mxu0 0
    %1696 = vmatprep.subr.bf16.mxu0 0
    %1697 = vmatpush1.bf16.msra.mxu0 0
    %1698 = vmatprep.subr.bf16.mxu0 0
    %1699 = vmatpush1.bf16.msra.mxu0 0
    %1700 = vmatprep.subr.bf16.mxu0 0
    %1701 = vmatpush1.bf16.msra.mxu0 0
    %1702 = vmatprep.subr.bf16.mxu0 0
    %1703 = vmatpush1.bf16.msra.mxu0 0
    %1704 = vmatprep.subr.bf16.mxu0 0
    %1705 = vmatpush1.bf16.msra.mxu0 0
    %1706 = vmatprep.subr.bf16.mxu0 0
    %1707 = vmatpush1.bf16.msra.mxu0 0
    %1708 = vmatprep.subr.bf16.mxu0 0
    %1709 = vmatpush1.bf16.msra.mxu0 0
    %1710 = vmatprep.mubr.bf16.mxu0 0
    %1711 = vmatmul.mubr.bf16.gmra.mrb[0].mxu0 %v1676
    %v1712 = vpop.f32.mrb[0].mxu0
    %v1713 = vadd.f32 %v88, %v1712
    %v1714 = vpop.f32.mrb[0].mxu0
    %v1715 = vpop.f32.mrb[0].mxu0
    %v1716 = vpop.f32.mrb[0].mxu0
    %1717 = vdwg.mxu0
    %v1718 = vxor.u32 %v1713, 2147483648
    %v1719 = vmul.f32 %v1718, 1.442695
    %v1720 = vpow.pop %v1719
    %v1721 = vadd.f32 %v1720, 1.0
    %v1722 = vrcp.pop %v1721
    %v1723 = vmul.f32 1.0, %v1722
    %v1724 = vtanh.pop %v1713
    %v1725 = vmul.f32 %v1723, %v1508
    %1727 = vrot.lane.b32.xlu0 %v1724, 64
    %v1728 = vpop.permute.xlu0 %1727
    %v1730 = vmul.f32 %v1723, %v1728
    %1732 = vrot.lane.b32.xlu0 %v1730, 32
    %v1733 = vpop.permute.xlu0 %1732
    %v1735 = vadd.f32 %v1725, %v1733
    %v1736 = vtanh.pop %v1735
    %1738 = vrot.lane.b32.xlu0 %v1736, 64
    %v1739 = vpop.permute.xlu0 %1738
    %v1741 = vmul.f32 %v1723, %v1739
    %1743 = vrot.lane.b32.xlu0 %v1741, 32
    %v1744 = vpop.permute.xlu0 %1743
    %1746 = vrot.lane.b32.xlu0 %v1594, 64
    %v1747 = vpop.permute.xlu0 %1746
    %v1749 = vsel %vm248, %v1744, %v1747
    %v1750 = vpack.c.bf16 %v1749, %v1749
    %v1752 = vsel %vm158, %v1750, 0
    %1754 = vmatprep.subr.bf16.mxu0 0
    %1755 = vmatpush1.bf16.msra.mxu0 %v364
    %1756 = vmatprep.subr.bf16.mxu0 0
    %1757 = vmatpush1.bf16.msra.mxu0 %v365
    %1758 = vmatprep.subr.bf16.mxu0 0
    %1759 = vmatpush1.bf16.msra.mxu0 %v366
    %1760 = vmatprep.subr.bf16.mxu0 0
    %1761 = vmatpush1.bf16.msra.mxu0 %v367
    %1762 = vmatprep.subr.bf16.mxu0 0
    %1763 = vmatpush1.bf16.msra.mxu0 0
    %1764 = vmatprep.subr.bf16.mxu0 0
    %1765 = vmatpush1.bf16.msra.mxu0 0
    %1766 = vmatprep.subr.bf16.mxu0 0
    %1767 = vmatpush1.bf16.msra.mxu0 0
    %1768 = vmatprep.subr.bf16.mxu0 0
    %1769 = vmatpush1.bf16.msra.mxu0 0
    %1770 = vmatprep.subr.bf16.mxu0 0
    %1771 = vmatpush1.bf16.msra.mxu0 0
    %1772 = vmatprep.subr.bf16.mxu0 0
    %1773 = vmatpush1.bf16.msra.mxu0 0
    %1774 = vmatprep.subr.bf16.mxu0 0
    %1775 = vmatpush1.bf16.msra.mxu0 0
    %1776 = vmatprep.subr.bf16.mxu0 0
    %1777 = vmatpush1.bf16.msra.mxu0 0
    %1778 = vmatprep.subr.bf16.mxu0 0
    %1779 = vmatpush1.bf16.msra.mxu0 0
    %1780 = vmatprep.subr.bf16.mxu0 0
    %1781 = vmatpush1.bf16.msra.mxu0 0
    %1782 = vmatprep.subr.bf16.mxu0 0
    %1783 = vmatpush1.bf16.msra.mxu0 0
    %1784 = vmatprep.subr.bf16.mxu0 0
    %1785 = vmatpush1.bf16.msra.mxu0 0
    %1786 = vmatprep.mubr.bf16.mxu0 0
    %1787 = vmatmul.mubr.bf16.gmra.mrb[0].mxu0 %v1752
    %v1788 = vpop.f32.mrb[0].mxu0
    %v1789 = vadd.f32 %v90, %v1788
    %v1790 = vpop.f32.mrb[0].mxu0
    %v1791 = vpop.f32.mrb[0].mxu0
    %v1792 = vpop.f32.mrb[0].mxu0
    %1793 = vdwg.mxu0
    %v1794 = vxor.u32 %v1789, 2147483648
    %v1795 = vmul.f32 %v1794, 1.442695
    %v1796 = vpow.pop %v1795
    %v1797 = vadd.f32 %v1796, 1.0
    %v1798 = vrcp.pop %v1797
    %v1799 = vmul.f32 1.0, %v1798
    %v1800 = vtanh.pop %v1789
    %1802 = vrot.lane.b32.xlu0 %v1658, 32
    %v1803 = vpop.permute.xlu0 %1802
    %v1805 = vmul.f32 %v1799, %v1803
    %1807 = vrot.lane.b32.xlu0 %v1800, 64
    %v1808 = vpop.permute.xlu0 %1807
    %v1810 = vmul.f32 %v1799, %v1808
    %1812 = vrot.lane.b32.xlu0 %v1810, 32
    %v1813 = vpop.permute.xlu0 %1812
    %v1815 = vadd.f32 %v1805, %v1813
    %v1816 = vtanh.pop %v1815
    %1818 = vrot.lane.b32.xlu0 %v1816, 64
    %v1819 = vpop.permute.xlu0 %1818
    %v1821 = vmul.f32 %v1799, %v1819
    %1823 = vrot.lane.b32.xlu0 %v1821, 32
    %v1824 = vpop.permute.xlu0 %1823
    %1826 = vrot.lane.b32.xlu0 %v1664, 64
    %v1827 = vpop.permute.xlu0 %1826
    %v1829 = vsel %vm248, %v1824, %v1827
    %v1830 = vpack.c.bf16 %v1829, %v1829
    %v1832 = vsel %vm158, %v1830, 0
    %1834 = vmatprep.subr.bf16.mxu0 0
    %1835 = vmatpush1.bf16.msra.mxu0 %v461
    %1836 = vmatprep.subr.bf16.mxu0 0
    %1837 = vmatpush1.bf16.msra.mxu0 %v462
    %1838 = vmatprep.subr.bf16.mxu0 0
    %1839 = vmatpush1.bf16.msra.mxu0 %v463
    %1840 = vmatprep.subr.bf16.mxu0 0
    %1841 = vmatpush1.bf16.msra.mxu0 %v464
    %1842 = vmatprep.subr.bf16.mxu0 0
    %1843 = vmatpush1.bf16.msra.mxu0 0
    %1844 = vmatprep.subr.bf16.mxu0 0
    %1845 = vmatpush1.bf16.msra.mxu0 0
    %1846 = vmatprep.subr.bf16.mxu0 0
    %1847 = vmatpush1.bf16.msra.mxu0 0
    %1848 = vmatprep.subr.bf16.mxu0 0
    %1849 = vmatpush1.bf16.msra.mxu0 0
    %1850 = vmatprep.subr.bf16.mxu0 0
    %1851 = vmatpush1.bf16.msra.mxu0 0
    %1852 = vmatprep.subr.bf16.mxu0 0
    %1853 = vmatpush1.bf16.msra.mxu0 0
    %1854 = vmatprep.subr.bf16.mxu0 0
    %1855 = vmatpush1.bf16.msra.mxu0 0
    %1856 = vmatprep.subr.bf16.mxu0 0
    %1857 = vmatpush1.bf16.msra.mxu0 0
    %1858 = vmatprep.subr.bf16.mxu0 0
    %1859 = vmatpush1.bf16.msra.mxu0 0
    %1860 = vmatprep.subr.bf16.mxu0 0
    %1861 = vmatpush1.bf16.msra.mxu0 0
    %1862 = vmatprep.subr.bf16.mxu0 0
    %1863 = vmatpush1.bf16.msra.mxu0 0
    %1864 = vmatprep.subr.bf16.mxu0 0
    %1865 = vmatpush1.bf16.msra.mxu0 0
    %1866 = vmatprep.mubr.bf16.mxu0 0
    %1867 = vmatmul.mubr.bf16.gmra.mrb[0].mxu0 %v1832
    %v1868 = vpop.f32.mrb[0].mxu0
    %v1869 = vadd.f32 %v92, %v1868
    %v1870 = vpop.f32.mrb[0].mxu0
    %v1871 = vpop.f32.mrb[0].mxu0
    %v1872 = vpop.f32.mrb[0].mxu0
    %1873 = vdwg.mxu0
    %v1874 = vxor.u32 %v1869, 2147483648
    %v1875 = vmul.f32 %v1874, 1.442695
    %v1876 = vpow.pop %v1875
    %v1877 = vadd.f32 %v1876, 1.0
    %v1878 = vrcp.pop %v1877
    %v1879 = vmul.f32 1.0, %v1878
    %v1880 = vtanh.pop %v1869
    %1882 = vrot.lane.b32.xlu0 %v1880, 64
    %v1883 = vpop.permute.xlu0 %1882
    %v1885 = vmul.f32 %v1879, %v1883
    %v1886 = vtanh.pop %v1885
    %1888 = vrot.lane.b32.xlu0 %v1886, 96
    %v1889 = vpop.permute.xlu0 %1888
    %v1891 = vmul.f32 %v1879, %v1889
    %1893 = vrot.lane.b32.xlu0 %v1891, 32
    %v1894 = vpop.permute.xlu0 %1893
    %1896 = vst.msk [vmem:[#allocation2 + $0x30] sm:$0xff] %vm248, %v1894
    %1897 = vrot.lane.b32.xlu0 %v1741, 64
    %v1898 = vpop.permute.xlu0 %1897
    %v1900 = vsel %vm248, %v247, %v1898
    %v1901 = vpack.c.bf16 %v1900, %v1900
    %v1903 = vsel %vm158, %v1901, 0
    %1905 = vmatprep.subr.bf16.mxu0 0
    %1906 = vmatpush1.bf16.msra.mxu0 %v267
    %1907 = vmatprep.subr.bf16.mxu0 0
    %1908 = vmatpush1.bf16.msra.mxu0 %v268
    %1909 = vmatprep.subr.bf16.mxu0 0
    %1910 = vmatpush1.bf16.msra.mxu0 %v269
    %1911 = vmatprep.subr.bf16.mxu0 0
    %1912 = vmatpush1.bf16.msra.mxu0 %v270
    %1913 = vmatprep.subr.bf16.mxu0 0
    %1914 = vmatpush1.bf16.msra.mxu0 0
    %1915 = vmatprep.subr.bf16.mxu0 0
    %1916 = vmatpush1.bf16.msra.mxu0 0
    %1917 = vmatprep.subr.bf16.mxu0 0
    %1918 = vmatpush1.bf16.msra.mxu0 0
    %1919 = vmatprep.subr.bf16.mxu0 0
    %1920 = vmatpush1.bf16.msra.mxu0 0
    %1921 = vmatprep.subr.bf16.mxu0 0
    %1922 = vmatpush1.bf16.msra.mxu0 0
    %1923 = vmatprep.subr.bf16.mxu0 0
    %1924 = vmatpush1.bf16.msra.mxu0 0
    %1925 = vmatprep.subr.bf16.mxu0 0
    %1926 = vmatpush1.bf16.msra.mxu0 0
    %1927 = vmatprep.subr.bf16.mxu0 0
    %1928 = vmatpush1.bf16.msra.mxu0 0
    %1929 = vmatprep.subr.bf16.mxu0 0
    %1930 = vmatpush1.bf16.msra.mxu0 0
    %1931 = vmatprep.subr.bf16.mxu0 0
    %1932 = vmatpush1.bf16.msra.mxu0 0
    %1933 = vmatprep.subr.bf16.mxu0 0
    %1934 = vmatpush1.bf16.msra.mxu0 0
    %1935 = vmatprep.subr.bf16.mxu0 0
    %1936 = vmatpush1.bf16.msra.mxu0 0
    %1937 = vmatprep.mubr.bf16.mxu0 0
    %1938 = vmatmul.mubr.bf16.gmra.mrb[0].mxu0 %v1903
    %v1939 = vpop.f32.mrb[0].mxu0
    %v1940 = vadd.f32 %v88, %v1939
    %v1941 = vpop.f32.mrb[0].mxu0
    %v1942 = vpop.f32.mrb[0].mxu0
    %v1943 = vpop.f32.mrb[0].mxu0
    %1944 = vdwg.mxu0
    %v1945 = vxor.u32 %v1940, 2147483648
    %v1946 = vmul.f32 %v1945, 1.442695
    %v1947 = vpow.pop %v1946
    %v1948 = vadd.f32 %v1947, 1.0
    %v1949 = vrcp.pop %v1948
    %v1950 = vmul.f32 1.0, %v1949
    %v1951 = vtanh.pop %v1940
    %v1952 = vmul.f32 %v1950, %v1735
    %1954 = vrot.lane.b32.xlu0 %v1951, 64
    %v1955 = vpop.permute.xlu0 %1954
    %v1957 = vmul.f32 %v1950, %v1955
    %1959 = vrot.lane.b32.xlu0 %v1957, 32
    %v1960 = vpop.permute.xlu0 %1959
    %v1962 = vadd.f32 %v1952, %v1960
    %v1963 = vtanh.pop %v1962
    %1965 = vrot.lane.b32.xlu0 %v1963, 64
    %v1966 = vpop.permute.xlu0 %1965
    %v1968 = vmul.f32 %v1950, %v1966
    %1970 = vrot.lane.b32.xlu0 %v1968, 32
    %v1971 = vpop.permute.xlu0 %1970
    %1973 = vrot.lane.b32.xlu0 %v1821, 64
    %v1974 = vpop.permute.xlu0 %1973
    %v1976 = vsel %vm248, %v1971, %v1974
    %v1977 = vpack.c.bf16 %v1976, %v1976
    %v1979 = vsel %vm158, %v1977, 0
    %1981 = vmatprep.subr.bf16.mxu0 0
    %1982 = vmatpush1.bf16.msra.mxu0 %v364
    %1983 = vmatprep.subr.bf16.mxu0 0
    %1984 = vmatpush1.bf16.msra.mxu0 %v365
    %1985 = vmatprep.subr.bf16.mxu0 0
    %1986 = vmatpush1.bf16.msra.mxu0 %v366
    %1987 = vmatprep.subr.bf16.mxu0 0
    %1988 = vmatpush1.bf16.msra.mxu0 %v367
    %1989 = vmatprep.subr.bf16.mxu0 0
    %1990 = vmatpush1.bf16.msra.mxu0 0
    %1991 = vmatprep.subr.bf16.mxu0 0
    %1992 = vmatpush1.bf16.msra.mxu0 0
    %1993 = vmatprep.subr.bf16.mxu0 0
    %1994 = vmatpush1.bf16.msra.mxu0 0
    %1995 = vmatprep.subr.bf16.mxu0 0
    %1996 = vmatpush1.bf16.msra.mxu0 0
    %1997 = vmatprep.subr.bf16.mxu0 0
    %1998 = vmatpush1.bf16.msra.mxu0 0
    %1999 = vmatprep.subr.bf16.mxu0 0
    %2000 = vmatpush1.bf16.msra.mxu0 0
    %2001 = vmatprep.subr.bf16.mxu0 0
    %2002 = vmatpush1.bf16.msra.mxu0 0
    %2003 = vmatprep.subr.bf16.mxu0 0
    %2004 = vmatpush1.bf16.msra.mxu0 0
    %2005 = vmatprep.subr.bf16.mxu0 0
    %2006 = vmatpush1.bf16.msra.mxu0 0
    %2007 = vmatprep.subr.bf16.mxu0 0
    %2008 = vmatpush1.bf16.msra.mxu0 0
    %2009 = vmatprep.subr.bf16.mxu0 0
    %2010 = vmatpush1.bf16.msra.mxu0 0
    %2011 = vmatprep.subr.bf16.mxu0 0
    %2012 = vmatpush1.bf16.msra.mxu0 0
    %2013 = vmatprep.mubr.bf16.mxu0 0
    %2014 = vmatmul.mubr.bf16.gmra.mrb[0].mxu0 %v1979
    %v2015 = vpop.f32.mrb[0].mxu0
    %v2016 = vadd.f32 %v90, %v2015
    %v2017 = vpop.f32.mrb[0].mxu0
    %v2018 = vpop.f32.mrb[0].mxu0
    %v2019 = vpop.f32.mrb[0].mxu0
    %2020 = vdwg.mxu0
    %v2021 = vxor.u32 %v2016, 2147483648
    %v2022 = vmul.f32 %v2021, 1.442695
    %v2023 = vpow.pop %v2022
    %v2024 = vadd.f32 %v2023, 1.0
    %v2025 = vrcp.pop %v2024
    %v2026 = vmul.f32 1.0, %v2025
    %v2027 = vtanh.pop %v2016
    %2029 = vrot.lane.b32.xlu0 %v1885, 32
    %v2030 = vpop.permute.xlu0 %2029
    %v2032 = vmul.f32 %v2026, %v2030
    %2034 = vrot.lane.b32.xlu0 %v2027, 64
    %v2035 = vpop.permute.xlu0 %2034
    %v2037 = vmul.f32 %v2026, %v2035
    %2039 = vrot.lane.b32.xlu0 %v2037, 32
    %v2040 = vpop.permute.xlu0 %2039
    %v2042 = vadd.f32 %v2032, %v2040
    %v2043 = vtanh.pop %v2042
    %2045 = vrot.lane.b32.xlu0 %v2043, 64
    %v2046 = vpop.permute.xlu0 %2045
    %v2048 = vmul.f32 %v2026, %v2046
    %2050 = vrot.lane.b32.xlu0 %v2048, 32
    %v2051 = vpop.permute.xlu0 %2050
    %2053 = vrot.lane.b32.xlu0 %v1891, 64
    %v2054 = vpop.permute.xlu0 %2053
    %v2056 = vsel %vm248, %v2051, %v2054
    %v2057 = vpack.c.bf16 %v2056, %v2056
    %v2059 = vsel %vm158, %v2057, 0
    %2061 = vmatprep.subr.bf16.mxu0 0
    %2062 = vmatpush1.bf16.msra.mxu0 %v461
    %2063 = vmatprep.subr.bf16.mxu0 0
    %2064 = vmatpush1.bf16.msra.mxu0 %v462
    %2065 = vmatprep.subr.bf16.mxu0 0
    %2066 = vmatpush1.bf16.msra.mxu0 %v463
    %2067 = vmatprep.subr.bf16.mxu0 0
    %2068 = vmatpush1.bf16.msra.mxu0 %v464
    %2069 = vmatprep.subr.bf16.mxu0 0
    %2070 = vmatpush1.bf16.msra.mxu0 0
    %2071 = vmatprep.subr.bf16.mxu0 0
    %2072 = vmatpush1.bf16.msra.mxu0 0
    %2073 = vmatprep.subr.bf16.mxu0 0
    %2074 = vmatpush1.bf16.msra.mxu0 0
    %2075 = vmatprep.subr.bf16.mxu0 0
    %2076 = vmatpush1.bf16.msra.mxu0 0
    %2077 = vmatprep.subr.bf16.mxu0 0
    %2078 = vmatpush1.bf16.msra.mxu0 0
    %2079 = vmatprep.subr.bf16.mxu0 0
    %2080 = vmatpush1.bf16.msra.mxu0 0
    %2081 = vmatprep.subr.bf16.mxu0 0
    %2082 = vmatpush1.bf16.msra.mxu0 0
    %2083 = vmatprep.subr.bf16.mxu0 0
    %2084 = vmatpush1.bf16.msra.mxu0 0
    %2085 = vmatprep.subr.bf16.mxu0 0
    %2086 = vmatpush1.bf16.msra.mxu0 0
    %2087 = vmatprep.subr.bf16.mxu0 0
    %2088 = vmatpush1.bf16.msra.mxu0 0
    %2089 = vmatprep.subr.bf16.mxu0 0
    %2090 = vmatpush1.bf16.msra.mxu0 0
    %2091 = vmatprep.subr.bf16.mxu0 0
    %2092 = vmatpush1.bf16.msra.mxu0 0
    %2093 = vmatprep.mubr.bf16.mxu0 0
    %2094 = vmatmul.mubr.bf16.gmra.mrb[0].mxu0 %v2059
    %v2095 = vpop.f32.mrb[0].mxu0
    %v2096 = vadd.f32 %v92, %v2095
    %v2097 = vpop.f32.mrb[0].mxu0
    %v2098 = vpop.f32.mrb[0].mxu0
    %v2099 = vpop.f32.mrb[0].mxu0
    %2100 = vdwg.mxu0
    %v2101 = vxor.u32 %v2096, 2147483648
    %v2102 = vmul.f32 %v2101, 1.442695
    %v2103 = vpow.pop %v2102
    %v2104 = vadd.f32 %v2103, 1.0
    %v2105 = vrcp.pop %v2104
    %v2106 = vmul.f32 1.0, %v2105
    %v2107 = vtanh.pop %v2096
    %2109 = vrot.lane.b32.xlu0 %v2107, 64
    %v2110 = vpop.permute.xlu0 %2109
    %v2112 = vmul.f32 %v2106, %v2110
    %v2113 = vtanh.pop %v2112
    %2115 = vrot.lane.b32.xlu0 %v2113, 96
    %v2116 = vpop.permute.xlu0 %2115
    %v2118 = vmul.f32 %v2106, %v2116
    %2120 = vrot.lane.b32.xlu0 %v2118, 32
    %v2121 = vpop.permute.xlu0 %2120
    %2123 = vst.msk [vmem:[#allocation2 + $0x38] sm:$0xff] %vm248, %v2121
    %v2124 = vld [vmem:[#allocation2] sm:$0xff]
    %v2125 = vld [vmem:[#allocation2 + $0x8] sm:$0xff]
    %v2126 = vld [vmem:[#allocation2 + $0x10] sm:$0xff]
    %v2127 = vld [vmem:[#allocation2 + $0x18] sm:$0xff]
    %v2128 = vld [vmem:[#allocation2 + $0x20] sm:$0xff]
    %v2129 = vld [vmem:[#allocation2 + $0x28] sm:$0xff]
    %v2130 = vld [vmem:[#allocation2 + $0x30] sm:$0xff]
    %v2131 = vld [vmem:[#allocation2 + $0x38] sm:$0xff]
    %v2132 = vpack.c.bf16 %v2125, %v2124
    %v2133 = vpack.c.bf16 %v2127, %v2126
    %v2134 = vpack.c.bf16 %v2129, %v2128
    %v2135 = vpack.c.bf16 %v2131, %v2130
    %v2136 = vlaneseq
    %v2137 = vshrl.u32 %v2136, 7
    %v2138 = vsub.s32 0, %v2137
    %v2139 = vrot.slane %v96, %v2138
    %v2144 = vunpack.c.l.b16 %v84
    %v2145 = vunpack.c.l.b16 %v85
    %v2146 = vunpack.c.l.b16 %v86
    %v2147 = vunpack.c.l.b16 %v87
    %v2148 = vpack.c.b16 %v2145, %v2144
    %v2149 = vpack.c.b16 %v2147, %v2146
    %v2153 = vsel %vm248, %v2132, 0
    %v2156 = vsel %vm248, %v2133, 0
    %v2159 = vsel %vm248, %v2134, 0
    %v2162 = vsel %vm248, %v2135, 0
    %2164 = vmatprep.subr.bf16.mxu0 0
    %2165 = vmatpush1.bf16.msra.mxu0 %v2148
    %2166 = vmatprep.subr.bf16.mxu0 0
    %2167 = vmatpush1.bf16.msra.mxu0 %v2149
    %2168 = vmatprep.subr.bf16.mxu0 0
    %2169 = vmatpush1.bf16.msra.mxu0 0
    %2170 = vmatprep.subr.bf16.mxu0 0
    %2171 = vmatpush1.bf16.msra.mxu0 0
    %2172 = vmatprep.subr.bf16.mxu0 0
    %2173 = vmatpush1.bf16.msra.mxu0 0
    %2174 = vmatprep.subr.bf16.mxu0 0
    %2175 = vmatpush1.bf16.msra.mxu0 0
    %2176 = vmatprep.subr.bf16.mxu0 0
    %2177 = vmatpush1.bf16.msra.mxu0 0
    %2178 = vmatprep.subr.bf16.mxu0 0
    %2179 = vmatpush1.bf16.msra.mxu0 0
    %2180 = vmatprep.subr.bf16.mxu0 0
    %2181 = vmatpush1.bf16.msra.mxu0 0
    %2182 = vmatprep.subr.bf16.mxu0 0
    %2183 = vmatpush1.bf16.msra.mxu0 0
    %2184 = vmatprep.subr.bf16.mxu0 0
    %2185 = vmatpush1.bf16.msra.mxu0 0
    %2186 = vmatprep.subr.bf16.mxu0 0
    %2187 = vmatpush1.bf16.msra.mxu0 0
    %2188 = vmatprep.subr.bf16.mxu0 0
    %2189 = vmatpush1.bf16.msra.mxu0 0
    %2190 = vmatprep.subr.bf16.mxu0 0
    %2191 = vmatpush1.bf16.msra.mxu0 0
    %2192 = vmatprep.subr.bf16.mxu0 0
    %2193 = vmatpush1.bf16.msra.mxu0 0
    %2194 = vmatprep.subr.bf16.mxu0 0
    %2195 = vmatpush1.bf16.msra.mxu0 0
    %2196 = vmatprep.mubr.bf16.mxu0 0
    %2197 = vmatmul.mubr.bf16.gmra.mrb[0].mxu0 %v2153
    %v2198 = vpop.f32.mrb[0].mxu0
    %v2199 = vadd.f32 %v2139, %v2198
    %v2200 = vpop.f32.mrb[0].mxu0
    %v2201 = vpop.f32.mrb[0].mxu0
    %v2202 = vadd.f32 %v2139, %v2201
    %v2203 = vpop.f32.mrb[0].mxu0
    %2204 = vmatprep.mubr.bf16.mxu0 0
    %2205 = vmatmul.mubr.bf16.gmra.mrb[0].mxu0 %v2156
    %v2206 = vpop.f32.mrb[0].mxu0
    %v2207 = vadd.f32 %v2139, %v2206
    %v2208 = vpop.f32.mrb[0].mxu0
    %v2209 = vpop.f32.mrb[0].mxu0
    %v2210 = vadd.f32 %v2139, %v2209
    %v2211 = vpop.f32.mrb[0].mxu0
    %2212 = vmatprep.mubr.bf16.mxu0 0
    %2213 = vmatmul.mubr.bf16.gmra.mrb[0].mxu0 %v2159
    %v2214 = vpop.f32.mrb[0].mxu0
    %v2215 = vadd.f32 %v2139, %v2214
    %v2216 = vpop.f32.mrb[0].mxu0
    %v2217 = vpop.f32.mrb[0].mxu0
    %v2218 = vadd.f32 %v2139, %v2217
    %v2219 = vpop.f32.mrb[0].mxu0
    %2220 = vmatprep.mubr.bf16.mxu0 0
    %2221 = vmatmul.mubr.bf16.gmra.mrb[0].mxu0 %v2162
    %v2222 = vpop.f32.mrb[0].mxu0
    %v2223 = vadd.f32 %v2139, %v2222
    %v2224 = vpop.f32.mrb[0].mxu0
    %v2225 = vpop.f32.mrb[0].mxu0
    %v2226 = vadd.f32 %v2139, %v2225
    %v2227 = vpop.f32.mrb[0].mxu0
    %2228 = vdwg.mxu0
    %2229 = vst [vmem:[#allocation9] sm:$0xff] %v2199
    %2230 = vst [vmem:[#allocation9 + $0x8] sm:$0xff] %v2202
    %2231 = vst [vmem:[#allocation9 + $0x10] sm:$0xff] %v2207
    %2232 = vst [vmem:[#allocation9 + $0x18] sm:$0xff] %v2210
    %2233 = vst [vmem:[#allocation9 + $0x20] sm:$0xff] %v2215
    %2234 = vst [vmem:[#allocation9 + $0x28] sm:$0xff] %v2218
    %2235 = vst [vmem:[#allocation9 + $0x30] sm:$0xff] %v2223
    %2236 = vst [vmem:[#allocation9 + $0x38] sm:$0xff] %v2226
    // Predicated region
    $region26: #{tpu_custom_call.1} parent=1 // pred_check
      _
    $region27: #{tpu_custom_call.1} parent=1 // pred_check_branch
      %2238 = sbr.rel (0) target = $region29
    $region28: #{tpu_custom_call.1} parent=1 // pred_region
      %s2240 = ssub.s32 1024, 1024
      %2241 = vsyncadd [#allocation5], %s2240
      %s2242 = sshll.u32 [#allocation9], 4
      %s2243 = int_to_ptr.vmem [resolvable:$true] %s2242
      %2248 = dma.vmem_to_hbm [thread:$0]  %s2243, 1024, %s3, [#allocation5], 128, 128, 8
    $region29: #{tpu_custom_call.1} parent=1 // pred_fallthru
      _
    // Predicated region
    $region30: #{tpu_custom_call.1} parent=1 // pred_check
      _
    $region31: #{tpu_custom_call.1} parent=1 // pred_check_branch
      %2250 = sbr.rel (0) target = $region33
    $region32: #{tpu_custom_call.1} parent=1 // pred_region
      %2251 = dma.done [#allocation5], 1024
    $region33: #{tpu_custom_call.1} parent=1 // pred_fallthru
      _
    %2252 = vsyncpa [#allocation4], 1
    %2253 = vsyncpa [#allocation7], 1
    %2254 = vsyncpa [#allocation5], 1

</llo_original>
